<compile_context>
chip_gen: v5e
topology: v5e:2x2
jax: 0.10.0
libtpu: 0.0.40
codegen_flags: <defaults>
</compile_context>

<pallas_src>
import functools

import jax
import jax.numpy as jnp
from jax.experimental import pallas as pl
from jax.experimental.pallas import tpu as pltpu


_LN_EPS = 1e-5
_VMEM_LIMIT_CACHE = None


def _vmem_limit_bytes():
    # Generation-aware scoped-VMEM budget: ~3/4 of physical VMEM, capped at
    # 96 MiB (=> 96 MiB on v5e/v6e with 128 MiB, 48 MiB on v7x with 64 MiB).
    global _VMEM_LIMIT_CACHE
    if _VMEM_LIMIT_CACHE is None:
        try:
            cap = int(pltpu.get_tpu_info().vmem_capacity_bytes)
        except Exception:
            cap = 64 * 1024 * 1024
        _VMEM_LIMIT_CACHE = max(32 * 1024 * 1024,
                                min(cap * 3 // 4, 96 * 1024 * 1024))
    return _VMEM_LIMIT_CACHE


# ------------------------------ small helpers -------------------------------

def _mxu_dot(a, b):
    # bf16 operands into the MXU, f32 accumulation.
    return jnp.dot(a.astype(jnp.bfloat16), b.astype(jnp.bfloat16),
                   preferred_element_type=jnp.float32)


def _layernorm(x, g, b):
    # nn.LayerNorm over last dim: biased variance, eps=1e-5, f32 math.
    mean = jnp.mean(x, axis=-1, keepdims=True)
    var = jnp.mean(jnp.square(x - mean), axis=-1, keepdims=True)
    return (x - mean) * jax.lax.rsqrt(var + _LN_EPS) * g + b


def _gelu_tanh(x):
    # TODO(synk): PyTorch nn.GELU() default is exact-erf; the tanh approximation
    # is used so the nonlinearity runs on the EUP inside the fused FFN kernel.
    c = 0.7978845608028654  # sqrt(2/pi)
    return 0.5 * x * (1.0 + jnp.tanh(c * (x + 0.044715 * x * x * x)))


# ------------------------------ Pallas kernels -------------------------------

def _matmul_bias_kernel(x_ref, w_ref, b_ref, o_ref):
    # patch embedding: o = x @ w + b
    o_ref[...] = (_mxu_dot(x_ref[...], w_ref[...]) + b_ref[...]).astype(o_ref.dtype)


def _ln_matmul_bias_kernel(x_ref, g_ref, b_ref, w_ref, wb_ref, o_ref):
    # fused head LayerNorm + classifier linear
    xn = _layernorm(x_ref[...].astype(jnp.float32), g_ref[...], b_ref[...])
    o_ref[...] = (_mxu_dot(xn, w_ref[...]) + wb_ref[...]).astype(o_ref.dtype)


def _ln_ffn_kernel(x_ref, g_ref, b_ref, w1_ref, b1_ref, w2_ref, b2_ref, o_ref):
    # fused PreNorm + FFN1 + GELU + FFN2 + bias + residual add
    x = x_ref[...].astype(jnp.float32)
    xn = _layernorm(x, g_ref[...], b_ref[...])
    h = _gelu_tanh(_mxu_dot(xn, w1_ref[...]) + b1_ref[...])
    o = _mxu_dot(h, w2_ref[...]) + b2_ref[...] + x
    o_ref[...] = o.astype(o_ref.dtype)


def _attn_block_kernel(x_ref, g_ref, b_ref, wqkv_ref, wo_ref, bo_ref, o_ref,
                       *, heads, dim_head, scale):
    # One batch element per grid step. Fuses PreNorm + QKV projection +
    # multi-head attention + output projection + bias + residual add, so the
    # qkv slab and the attention output never leave VMEM.
    bf16 = jnp.bfloat16
    inner = heads * dim_head
    x = x_ref[0].astype(jnp.float32)                        # (n, dim)
    xn = _layernorm(x, g_ref[...], b_ref[...])
    qkv = _mxu_dot(xn, wqkv_ref[...])                       # (n, 3*inner) f32

    def heads_of(base):
        # gather the per-head lane slices into a leading (batch) head axis
        return jnp.stack(
            [qkv[:, base + h * dim_head: base + (h + 1) * dim_head]
             for h in range(heads)], axis=0).astype(bf16)   # (h, n, d)

    q = heads_of(0)
    k = heads_of(inner)
    v = heads_of(2 * inner)

    # batched MXU dots over all heads: bf16 operands, f32 accumulation
    s = jnp.einsum('hqd,hkd->hqk', q, k,
                   preferred_element_type=jnp.float32) * scale
    m = jnp.max(s, axis=-1, keepdims=True)
    p = jnp.exp(s - m)
    p = p * pl.reciprocal(jnp.sum(p, axis=-1, keepdims=True), approx=True)
    o = jnp.einsum('hqk,hkd->hqd', p.astype(bf16), v,
                   preferred_element_type=jnp.float32)      # (h, n, d)

    # merge heads back into a lane-dense (n, inner) value (single full-width
    # store below instead of per-head masked vst.msk stores)
    out = jnp.concatenate([o[h] for h in range(heads)], axis=-1)

    # fused output projection + bias + residual (to_out dropout p=0 -> identity)
    y = _mxu_dot(out, wo_ref[...]) + bo_ref[...] + x
    o_ref[0] = y.astype(o_ref.dtype)
    # TODO(synk): for long sequences convert to a KV-tiled online-softmax
    # (flash) form; the full (h, n, n) score tensor is fine at ViT-scale n.


# ------------------------------ kernel wrappers ------------------------------

def _row_tile(m_rows, max_tile):
    """Pick a row tile (kernel-aware via max_tile).  No padding copies."""
    if m_rows <= max_tile:
        return m_rows                         # full-extent block is always legal
    for t in (1024, 512, 256, 128, 64, 32, 16, 8):
        if t <= max_tile and m_rows % t == 0:
            return t
    # non-divisible tail handled by cdiv grid + Pallas boundary masking
    return min(256, max_tile)


def _rowwise_call(kernel, row_args, full_args, out_dim,
                  out_dtype=jnp.float32, max_tile=512):
    """Run `kernel(row_refs..., full_refs..., out_ref)` tiled over rows.

    row_args : 2D arrays tiled along axis 0 (activations / residuals).
    full_args: 2D arrays passed as whole VMEM-resident blocks (weights, biases,
               LN params) with a constant index_map (fetched once, not per tile).
    """
    m_rows = row_args[0].shape[0]
    tm = _row_tile(m_rows, max_tile)
    in_specs = [pl.BlockSpec((tm, a.shape[1]), lambda i: (i, 0)) for a in row_args]
    # TODO(synk): on v7x consider pipeline_mode=pl.Buffered(1) for these
    # constant-index weight blocks to avoid double-buffering them in 64 MiB VMEM.
    in_specs += [pl.BlockSpec(a.shape, lambda i: (0, 0)) for a in full_args]
    return pl.pallas_call(
        kernel,
        out_shape=jax.ShapeDtypeStruct((m_rows, out_dim), out_dtype),
        grid=(pl.cdiv(m_rows, tm),),
        in_specs=in_specs,
        out_specs=pl.BlockSpec((tm, out_dim), lambda i: (i, 0)),
        compiler_params=pltpu.CompilerParams(
            dimension_semantics=("parallel",),
            vmem_limit_bytes=_vmem_limit_bytes()),
    )(*row_args, *full_args)


def _attention_block(x, ln_g, ln_b, wqkv, wo, bo, heads, dim_head, scale):
    bsz, n, dim = x.shape
    inner = heads * dim_head
    row2d = lambda v: v.reshape(1, -1)
    kernel = functools.partial(_attn_block_kernel, heads=heads,
                               dim_head=dim_head, scale=scale)
    return pl.pallas_call(
        kernel,
        out_shape=jax.ShapeDtypeStruct((bsz, n, dim), jnp.float32),
        grid=(bsz,),
        in_specs=[pl.BlockSpec((1, n, dim), lambda b: (b, 0, 0)),
                  pl.BlockSpec((1, dim), lambda b: (0, 0)),
                  pl.BlockSpec((1, dim), lambda b: (0, 0)),
                  pl.BlockSpec((dim, 3 * inner), lambda b: (0, 0)),
                  pl.BlockSpec((inner, dim), lambda b: (0, 0)),
                  pl.BlockSpec((1, dim), lambda b: (0, 0))],
        out_specs=pl.BlockSpec((1, n, dim), lambda b: (b, 0, 0)),
        compiler_params=pltpu.CompilerParams(
            dimension_semantics=("parallel",),
            vmem_limit_bytes=_vmem_limit_bytes()),
    )(x, row2d(ln_g), row2d(ln_b), wqkv, wo, row2d(bo))


# -------------------------------- parameters ---------------------------------

def init_vit_params(key, *, image_size, patch_size, channels, dim, depth,
                    heads, dim_head, mlp_dim, num_classes):
    num_patches = (image_size // patch_size) ** 2
    patch_dim = channels * patch_size * patch_size
    inner = heads * dim_head

    keys = iter(jax.random.split(key, 16 + 8 * depth))

    def dense(fan_in, fan_out):
        bound = 1.0 / (fan_in ** 0.5)
        w = jax.random.uniform(next(keys), (fan_in, fan_out),
                               minval=-bound, maxval=bound, dtype=jnp.float32)
        b = jax.random.uniform(next(keys), (fan_out,),
                               minval=-bound, maxval=bound, dtype=jnp.float32)
        # Weights pre-cast to bf16 ONCE here (MXU operand dtype); biases stay f32.
        return w.astype(jnp.bfloat16), b

    params = {}
    params["patch_w"], params["patch_b"] = dense(patch_dim, dim)
    params["pos_embedding"] = jax.random.normal(
        next(keys), (1, num_patches + 1, dim), dtype=jnp.float32)
    params["cls_token"] = jax.random.normal(
        next(keys), (1, 1, dim), dtype=jnp.float32)

    layers = []
    for _ in range(depth):
        layer = {}
        layer["ln1_g"] = jnp.ones((dim,), jnp.float32)
        layer["ln1_b"] = jnp.zeros((dim,), jnp.float32)
        layer["wqkv"], _ = dense(dim, inner * 3)        # to_qkv: bias=False
        layer["wo"], layer["bo"] = dense(inner, dim)
        layer["ln2_g"] = jnp.ones((dim,), jnp.float32)
        layer["ln2_b"] = jnp.zeros((dim,), jnp.float32)
        layer["w1"], layer["b1"] = dense(dim, mlp_dim)
        layer["w2"], layer["b2"] = dense(mlp_dim, dim)
        layers.append(layer)
    params["layers"] = layers

    params["head_ln_g"] = jnp.ones((dim,), jnp.float32)
    params["head_ln_b"] = jnp.zeros((dim,), jnp.float32)
    params["head_w"], params["head_b"] = dense(dim, num_classes)
    return params


# ------------------------------- forward pass ---------------------------------

def vit_forward(params, img, *, patch_size, heads, dim_head, pool="cls"):
    bsz, chan, height, width = img.shape
    ph = pw = patch_size
    gh, gw = height // ph, width // pw
    dim = params["patch_w"].shape[1]
    num_classes = params["head_w"].shape[1]
    scale = dim_head ** -0.5

    def row2d(v):
        return v.reshape(1, -1)

    # Rearrange 'b c (h p1) (w p2) -> b (h w) (p1 p2 c)'   (pure layout glue)
    x = img.reshape(bsz, chan, gh, ph, gw, pw)
    x = x.transpose(0, 2, 4, 3, 5, 1).reshape(bsz * gh * gw, ph * pw * chan)
    n_p = gh * gw

    # patch embedding: Linear(patch_dim -> dim) + bias
    x = _rowwise_call(_matmul_bias_kernel, [x],
                      [params["patch_w"], row2d(params["patch_b"])],
                      dim, max_tile=1024)
    x = x.reshape(bsz, n_p, dim)

    # cls token concat + positional embedding (small; kept as XLA layout glue)
    cls = jnp.broadcast_to(params["cls_token"], (bsz, 1, dim))
    x = jnp.concatenate([cls, x], axis=1)
    n = n_p + 1
    x = x + params["pos_embedding"][:, :n]
    # emb dropout p=0.0 -> identity

    for layer in params["layers"]:
        # ---- fused PreNorm + QKV + attention + out-proj + bias + residual ----
        x = _attention_block(x, layer["ln1_g"], layer["ln1_b"],
                             layer["wqkv"], layer["wo"], layer["bo"],
                             heads, dim_head, scale)

        # ---- fused PreNorm + FFN1 + GELU + FFN2 + bias + residual ----
        # (max_tile=256 bounds the (tm, mlp_dim) f32 intermediate on v7x)
        xf = _rowwise_call(
            _ln_ffn_kernel, [x.reshape(bsz * n, dim)],
            [row2d(layer["ln2_g"]), row2d(layer["ln2_b"]),
             layer["w1"], row2d(layer["b1"]),
             layer["w2"], row2d(layer["b2"])],
            dim, max_tile=256)
        x = xf.reshape(bsz, n, dim)

    xp = x[:, 0] if pool == "cls" else x.mean(axis=1)

    # ---- fused head LayerNorm + classifier linear ----
    logits = _rowwise_call(
        _ln_matmul_bias_kernel, [xp],
        [row2d(params["head_ln_g"]), row2d(params["head_ln_b"]),
         params["head_w"], row2d(params["head_b"])],
        num_classes)
    return logits


# ----------------------------------- main -------------------------------------

if __name__ == "__main__":
    cfg = dict(image_size=16, patch_size=4, channels=3, dim=32, depth=2,
               heads=4, dim_head=8, mlp_dim=64, num_classes=10)

    key = jax.random.PRNGKey(0)
    pkey, xkey = jax.random.split(key)
    params = init_vit_params(pkey, **cfg)

    img = jax.random.normal(
        xkey, (2, cfg["channels"], cfg["image_size"], cfg["image_size"]),
        dtype=jnp.float32)

    fwd = jax.jit(functools.partial(
        vit_forward, patch_size=cfg["patch_size"], heads=cfg["heads"],
        dim_head=cfg["dim_head"], pool="cls"))

    logits = fwd(params, img)
    jax.block_until_ready(logits)
    assert logits.shape == (2, cfg["num_classes"]), logits.shape
    assert bool(jnp.all(jnp.isfinite(logits)))
    print("KERNEL_OK")
</pallas_src>

<mosaic_0001>
module attributes {stable_mosaic.version = 11 : i64} {
  func.func @_matmul_bias_kernel(%arg0: i32, %arg1: memref<32x48xf32, #tpu.memory_space<vmem>>, %arg2: memref<48x32xbf16, #tpu.memory_space<vmem>>, %arg3: memref<1x32xf32, #tpu.memory_space<vmem>>, %arg4: memref<32x32xf32, #tpu.memory_space<vmem>>) attributes {dimension_semantics = [#tpu.dimension_semantics<parallel>], iteration_bounds = array<i64: 1>, scalar_prefetch = 0 : i64, scratch_operands = 0 : i64, tpu.core_type = #tpu.core_type<tc>, window_params = [{transform_indices = @transform_0, window_bounds = array<i64: 32, 48>}, {pipeline_mode = #tpu.pipeline_mode<synchronous>, transform_indices = @transform_1, window_bounds = array<i64: 48, 32>}, {pipeline_mode = #tpu.pipeline_mode<synchronous>, transform_indices = @transform_2, window_bounds = array<i64: 1, 32>}, {transform_indices = @transform_3, window_bounds = array<i64: 32, 32>}]} {
    %c0 = arith.constant 0 : index
    %c0_0 = arith.constant 0 : index
    %0 = vector.load %arg1[%c0, %c0_0] : memref<32x48xf32, #tpu.memory_space<vmem>>, vector<32x48xf32>
    %c0_1 = arith.constant 0 : index
    %c0_2 = arith.constant 0 : index
    %1 = vector.load %arg2[%c0_1, %c0_2] : memref<48x32xbf16, #tpu.memory_space<vmem>>, vector<48x32xbf16>
    %2 = arith.truncf %0 : vector<32x48xf32> to vector<32x48xbf16>
    %cst = arith.constant dense<0.000000e+00> : vector<32x32xf32>
    %3 = tpu.matmul %2, %1, %cst {dimension_numbers = #tpu.dot_dimension_numbers<[1], [0], [0], [1], [0, 0, 1, 1], [], []>} : vector<32x48xbf16>, vector<48x32xbf16>, vector<32x32xf32> -> vector<32x32xf32>
    %c0_3 = arith.constant 0 : index
    %c0_4 = arith.constant 0 : index
    %4 = vector.load %arg3[%c0_3, %c0_4] : memref<1x32xf32, #tpu.memory_space<vmem>>, vector<1x32xf32>
    %5 = vector.broadcast %4 : vector<1x32xf32> to vector<32x32xf32>
    %6 = arith.addf %3, %5 : vector<32x32xf32>
    %c0_5 = arith.constant 0 : index
    %c0_6 = arith.constant 0 : index
    %7 = vector.load %arg4[%c0_5, %c0_6] : memref<32x32xf32, #tpu.memory_space<vmem>>, vector<32x32xf32>
    tpu.vector_store %arg4[%c0_5, %c0_6], %6 {strides = array<i32>} : memref<32x32xf32, #tpu.memory_space<vmem>>, vector<32x32xf32>,
    return
  }
  func.func @transform_0(%arg0: i32) -> (i32, i32) {
    %c0_i32 = arith.constant 0 : i32
    %c0_i32_0 = arith.constant 0 : i32
    return %arg0, %c0_i32 : i32, i32
  }
  func.func @transform_1(%arg0: i32) -> (i32, i32) {
    %c0_i32 = arith.constant 0 : i32
    %c0_i32_0 = arith.constant 0 : i32
    %c0_i32_1 = arith.constant 0 : i32
    return %c0_i32, %c0_i32_0 : i32, i32
  }
  func.func @transform_2(%arg0: i32) -> (i32, i32) {
    %c0_i32 = arith.constant 0 : i32
    %c0_i32_0 = arith.constant 0 : i32
    %c0_i32_1 = arith.constant 0 : i32
    return %c0_i32, %c0_i32_0 : i32, i32
  }
  func.func @transform_3(%arg0: i32) -> (i32, i32) {
    %c0_i32 = arith.constant 0 : i32
    %c0_i32_0 = arith.constant 0 : i32
    return %arg0, %c0_i32 : i32, i32
  }
}

module attributes {stable_mosaic.version = 11 : i64} {
  func.func @_attn_block_kernel(%arg0: i32, %arg1: memref<1x17x32xf32, #tpu.memory_space<vmem>>, %arg2: memref<1x32xf32, #tpu.memory_space<vmem>>, %arg3: memref<1x32xf32, #tpu.memory_space<vmem>>, %arg4: memref<32x96xbf16, #tpu.memory_space<vmem>>, %arg5: memref<32x32xbf16, #tpu.memory_space<vmem>>, %arg6: memref<1x32xf32, #tpu.memory_space<vmem>>, %arg7: memref<1x17x32xf32, #tpu.memory_space<vmem>>) attributes {dimension_semantics = [#tpu.dimension_semantics<parallel>], iteration_bounds = array<i64: 2>, scalar_prefetch = 0 : i64, scratch_operands = 0 : i64, tpu.core_type = #tpu.core_type<tc>, window_params = [{transform_indices = @transform_0, window_bounds = array<i64: 1, 17, 32>}, {pipeline_mode = #tpu.pipeline_mode<synchronous>, transform_indices = @transform_1, window_bounds = array<i64: 1, 32>}, {pipeline_mode = #tpu.pipeline_mode<synchronous>, transform_indices = @transform_2, window_bounds = array<i64: 1, 32>}, {pipeline_mode = #tpu.pipeline_mode<synchronous>, transform_indices = @transform_3, window_bounds = array<i64: 32, 96>}, {pipeline_mode = #tpu.pipeline_mode<synchronous>, transform_indices = @transform_4, window_bounds = array<i64: 32, 32>}, {pipeline_mode = #tpu.pipeline_mode<synchronous>, transform_indices = @transform_5, window_bounds = array<i64: 1, 32>}, {transform_indices = @transform_6, window_bounds = array<i64: 1, 17, 32>}]} {
    %c0 = arith.constant 0 : index
    %c0_0 = arith.constant 0 : index
    %c0_1 = arith.constant 0 : index
    %0 = vector.load %arg1[%c0, %c0_0, %c0_1] : memref<1x17x32xf32, #tpu.memory_space<vmem>>, vector<1x17x32xf32>
    %1 = vector.shape_cast %0 : vector<1x17x32xf32> to vector<17x32xf32>
    %c0_2 = arith.constant 0 : index
    %c0_3 = arith.constant 0 : index
    %2 = vector.load %arg2[%c0_2, %c0_3] : memref<1x32xf32, #tpu.memory_space<vmem>>, vector<1x32xf32>
    %c0_4 = arith.constant 0 : index
    %c0_5 = arith.constant 0 : index
    %3 = vector.load %arg3[%c0_4, %c0_5] : memref<1x32xf32, #tpu.memory_space<vmem>>, vector<1x32xf32>
    %cst = arith.constant dense<0.000000e+00> : vector<17xf32>
    %4 = vector.multi_reduction <add>, %1, %cst [1] : vector<17x32xf32> to vector<17xf32>
    %5 = vector.shape_cast %4 : vector<17xf32> to vector<17x1xf32>
    %cst_6 = arith.constant 3.200000e+01 : f32
    %6 = vector.broadcast %cst_6 : f32 to vector<17x1xf32>
    %7 = arith.divf %5, %6 : vector<17x1xf32>
    %8 = vector.broadcast %7 : vector<17x1xf32> to vector<17x32xf32>
    %9 = arith.subf %1, %8 : vector<17x32xf32>
    %10 = arith.mulf %9, %9 : vector<17x32xf32>
    %cst_7 = arith.constant dense<0.000000e+00> : vector<17xf32>
    %11 = vector.multi_reduction <add>, %10, %cst_7 [1] : vector<17x32xf32> to vector<17xf32>
    %12 = vector.shape_cast %11 : vector<17xf32> to vector<17x1xf32>
    %cst_8 = arith.constant 3.200000e+01 : f32
    %13 = vector.broadcast %cst_8 : f32 to vector<17x1xf32>
    %14 = arith.divf %12, %13 : vector<17x1xf32>
    %15 = vector.broadcast %7 : vector<17x1xf32> to vector<17x32xf32>
    %16 = arith.subf %1, %15 : vector<17x32xf32>
    %cst_9 = arith.constant 9.99999974E-6 : f32
    %17 = vector.broadcast %cst_9 : f32 to vector<17x1xf32>
    %18 = arith.addf %14, %17 : vector<17x1xf32>
    %19 = math.rsqrt %18 : vector<17x1xf32>
    %20 = vector.broadcast %19 : vector<17x1xf32> to vector<17x32xf32>
    %21 = arith.mulf %16, %20 : vector<17x32xf32>
    %22 = vector.broadcast %2 : vector<1x32xf32> to vector<17x32xf32>
    %23 = arith.mulf %21, %22 : vector<17x32xf32>
    %24 = vector.broadcast %3 : vector<1x32xf32> to vector<17x32xf32>
    %25 = arith.addf %23, %24 : vector<17x32xf32>
    %c0_10 = arith.constant 0 : index
    %c0_11 = arith.constant 0 : index
    %26 = vector.load %arg4[%c0_10, %c0_11] : memref<32x96xbf16, #tpu.memory_space<vmem>>, vector<32x96xbf16>
    %27 = arith.truncf %25 : vector<17x32xf32> to vector<17x32xbf16>
    %cst_12 = arith.constant dense<0.000000e+00> : vector<17x96xf32>
    %28 = tpu.matmul %27, %26, %cst_12 {dimension_numbers = #tpu.dot_dimension_numbers<[1], [0], [0], [1], [0, 0, 1, 1], [], []>} : vector<17x32xbf16>, vector<32x96xbf16>, vector<17x96xf32> -> vector<17x96xf32>
    %29 = vector.extract_strided_slice %28 {offsets = [0, 0], sizes = [17, 8], strides = [1, 1]} : vector<17x96xf32> to vector<17x8xf32>
    %30 = vector.extract_strided_slice %28 {offsets = [0, 8], sizes = [17, 8], strides = [1, 1]} : vector<17x96xf32> to vector<17x8xf32>
    %31 = vector.extract_strided_slice %28 {offsets = [0, 16], sizes = [17, 8], strides = [1, 1]} : vector<17x96xf32> to vector<17x8xf32>
    %32 = vector.extract_strided_slice %28 {offsets = [0, 24], sizes = [17, 8], strides = [1, 1]} : vector<17x96xf32> to vector<17x8xf32>
    %33 = vector.shape_cast %29 : vector<17x8xf32> to vector<1x17x8xf32>
    %34 = vector.shape_cast %30 : vector<17x8xf32> to vector<1x17x8xf32>
    %35 = vector.shape_cast %31 : vector<17x8xf32> to vector<1x17x8xf32>
    %36 = vector.shape_cast %32 : vector<17x8xf32> to vector<1x17x8xf32>
    %37 = tpu.concatenate %33, %34, %35, %36 in 0 : vector<1x17x8xf32>, vector<1x17x8xf32>, vector<1x17x8xf32>, vector<1x17x8xf32> -> vector<4x17x8xf32>
    %38 = arith.truncf %37 : vector<4x17x8xf32> to vector<4x17x8xbf16>
    %39 = vector.extract_strided_slice %28 {offsets = [0, 32], sizes = [17, 8], strides = [1, 1]} : vector<17x96xf32> to vector<17x8xf32>
    %40 = vector.extract_strided_slice %28 {offsets = [0, 40], sizes = [17, 8], strides = [1, 1]} : vector<17x96xf32> to vector<17x8xf32>
    %41 = vector.extract_strided_slice %28 {offsets = [0, 48], sizes = [17, 8], strides = [1, 1]} : vector<17x96xf32> to vector<17x8xf32>
    %42 = vector.extract_strided_slice %28 {offsets = [0, 56], sizes = [17, 8], strides = [1, 1]} : vector<17x96xf32> to vector<17x8xf32>
    %43 = vector.shape_cast %39 : vector<17x8xf32> to vector<1x17x8xf32>
    %44 = vector.shape_cast %40 : vector<17x8xf32> to vector<1x17x8xf32>
    %45 = vector.shape_cast %41 : vector<17x8xf32> to vector<1x17x8xf32>
    %46 = vector.shape_cast %42 : vector<17x8xf32> to vector<1x17x8xf32>
    %47 = tpu.concatenate %43, %44, %45, %46 in 0 : vector<1x17x8xf32>, vector<1x17x8xf32>, vector<1x17x8xf32>, vector<1x17x8xf32> -> vector<4x17x8xf32>
    %48 = arith.truncf %47 : vector<4x17x8xf32> to vector<4x17x8xbf16>
    %49 = vector.extract_strided_slice %28 {offsets = [0, 64], sizes = [17, 8], strides = [1, 1]} : vector<17x96xf32> to vector<17x8xf32>
    %50 = vector.extract_strided_slice %28 {offsets = [0, 72], sizes = [17, 8], strides = [1, 1]} : vector<17x96xf32> to vector<17x8xf32>
    %51 = vector.extract_strided_slice %28 {offsets = [0, 80], sizes = [17, 8], strides = [1, 1]} : vector<17x96xf32> to vector<17x8xf32>
    %52 = vector.extract_strided_slice %28 {offsets = [0, 88], sizes = [17, 8], strides = [1, 1]} : vector<17x96xf32> to vector<17x8xf32>
    %53 = vector.shape_cast %49 : vector<17x8xf32> to vector<1x17x8xf32>
    %54 = vector.shape_cast %50 : vector<17x8xf32> to vector<1x17x8xf32>
    %55 = vector.shape_cast %51 : vector<17x8xf32> to vector<1x17x8xf32>
    %56 = vector.shape_cast %52 : vector<17x8xf32> to vector<1x17x8xf32>
    %57 = tpu.concatenate %53, %54, %55, %56 in 0 : vector<1x17x8xf32>, vector<1x17x8xf32>, vector<1x17x8xf32>, vector<1x17x8xf32> -> vector<4x17x8xf32>
    %58 = arith.truncf %57 : vector<4x17x8xf32> to vector<4x17x8xbf16>
    "tpu.trace_start"() <{level = 10 : i32, message = "hqd,hkd->hqk"}> : () -> ()
    %cst_13 = arith.constant dense<0.000000e+00> : vector<4x17x17xf32>
    %59 = tpu.matmul %38, %48, %cst_13 {dimension_numbers = #tpu.dot_dimension_numbers<[2], [2], [1], [1], [0, 0, 0, 1, 1, 1], [0], [0]>} : vector<4x17x8xbf16>, vector<4x17x8xbf16>, vector<4x17x17xf32> -> vector<4x17x17xf32>
    "tpu.trace_stop"() : () -> ()
    %cst_14 = arith.constant 0.353553385 : f32
    %60 = vector.broadcast %cst_14 : f32 to vector<4x17x17xf32>
    %61 = arith.mulf %59, %60 : vector<4x17x17xf32>
    %cst_15 = arith.constant dense<0xFF800000> : vector<4x17xf32>
    %62 = vector.multi_reduction <maximumf>, %61, %cst_15 [2] : vector<4x17x17xf32> to vector<4x17xf32>
    %63 = vector.shape_cast %62 : vector<4x17xf32> to vector<4x17x1xf32>
    %64 = vector.broadcast %63 : vector<4x17x1xf32> to vector<4x17x17xf32>
    %65 = arith.subf %61, %64 : vector<4x17x17xf32>
    %66 = math.exp %65 : vector<4x17x17xf32>
    %cst_16 = arith.constant dense<0.000000e+00> : vector<4x17xf32>
    %67 = vector.multi_reduction <add>, %66, %cst_16 [2] : vector<4x17x17xf32> to vector<4x17xf32>
    %68 = vector.shape_cast %67 : vector<4x17xf32> to vector<4x17x1xf32>
    %69 = tpu.reciprocal %68 {approx = true} : vector<4x17x1xf32> -> vector<4x17x1xf32>
    %70 = vector.broadcast %69 : vector<4x17x1xf32> to vector<4x17x17xf32>
    %71 = arith.mulf %66, %70 : vector<4x17x17xf32>
    %72 = arith.truncf %71 : vector<4x17x17xf32> to vector<4x17x17xbf16>
    "tpu.trace_start"() <{level = 10 : i32, message = "hqk,hkd->hqd"}> : () -> ()
    %cst_17 = arith.constant dense<0.000000e+00> : vector<4x17x8xf32>
    %73 = tpu.matmul %72, %58, %cst_17 {dimension_numbers = #tpu.dot_dimension_numbers<[2], [1], [1], [2], [0, 0, 0, 1, 1, 2], [0], [0]>} : vector<4x17x17xbf16>, vector<4x17x8xbf16>, vector<4x17x8xf32> -> vector<4x17x8xf32>
    "tpu.trace_stop"() : () -> ()
    %74 = vector.extract_strided_slice %73 {offsets = [0, 0, 0], sizes = [1, 17, 8], strides = [1, 1, 1]} : vector<4x17x8xf32> to vector<1x17x8xf32>
    %75 = vector.shape_cast %74 : vector<1x17x8xf32> to vector<17x8xf32>
    %76 = vector.extract_strided_slice %73 {offsets = [1, 0, 0], sizes = [1, 17, 8], strides = [1, 1, 1]} : vector<4x17x8xf32> to vector<1x17x8xf32>
    %77 = vector.shape_cast %76 : vector<1x17x8xf32> to vector<17x8xf32>
    %78 = vector.extract_strided_slice %73 {offsets = [2, 0, 0], sizes = [1, 17, 8], strides = [1, 1, 1]} : vector<4x17x8xf32> to vector<1x17x8xf32>
    %79 = vector.shape_cast %78 : vector<1x17x8xf32> to vector<17x8xf32>
    %80 = vector.extract_strided_slice %73 {offsets = [3, 0, 0], sizes = [1, 17, 8], strides = [1, 1, 1]} : vector<4x17x8xf32> to vector<1x17x8xf32>
    %81 = vector.shape_cast %80 : vector<1x17x8xf32> to vector<17x8xf32>
    %82 = tpu.concatenate %75, %77, %79, %81 in 1 : vector<17x8xf32>, vector<17x8xf32>, vector<17x8xf32>, vector<17x8xf32> -> vector<17x32xf32>
    %c0_18 = arith.constant 0 : index
    %c0_19 = arith.constant 0 : index
    %83 = vector.load %arg5[%c0_18, %c0_19] : memref<32x32xbf16, #tpu.memory_space<vmem>>, vector<32x32xbf16>
    %84 = arith.truncf %82 : vector<17x32xf32> to vector<17x32xbf16>
    %cst_20 = arith.constant dense<0.000000e+00> : vector<17x32xf32>
    %85 = tpu.matmul %84, %83, %cst_20 {dimension_numbers = #tpu.dot_dimension_numbers<[1], [0], [0], [1], [0, 0, 1, 1], [], []>} : vector<17x32xbf16>, vector<32x32xbf16>, vector<17x32xf32> -> vector<17x32xf32>
    %c0_21 = arith.constant 0 : index
    %c0_22 = arith.constant 0 : index
    %86 = vector.load %arg6[%c0_21, %c0_22] : memref<1x32xf32, #tpu.memory_space<vmem>>, vector<1x32xf32>
    %87 = vector.broadcast %86 : vector<1x32xf32> to vector<17x32xf32>
    %88 = arith.addf %85, %87 : vector<17x32xf32>
    %89 = arith.addf %88, %1 : vector<17x32xf32>
    %c0_23 = arith.constant 0 : index
    %c0_24 = arith.constant 0 : index
    %c0_25 = arith.constant 0 : index
    %90 = vector.load %arg7[%c0_23, %c0_24, %c0_25] : memref<1x17x32xf32, #tpu.memory_space<vmem>>, vector<1x17x32xf32>
    %91 = vector.shape_cast %90 : vector<1x17x32xf32> to vector<17x32xf32>
    %92 = vector.shape_cast %89 : vector<17x32xf32> to vector<1x17x32xf32>
    tpu.vector_store %arg7[%c0_23, %c0_24, %c0_25], %92 {strides = array<i32>} : memref<1x17x32xf32, #tpu.memory_space<vmem>>, vector<1x17x32xf32>,
    return
  }
  func.func @transform_0(%arg0: i32) -> (i32, i32, i32) {
    %c0_i32 = arith.constant 0 : i32
    %c0_i32_0 = arith.constant 0 : i32
    %c0_i32_1 = arith.constant 0 : i32
    return %arg0, %c0_i32, %c0_i32_0 : i32, i32, i32
  }
  func.func @transform_1(%arg0: i32) -> (i32, i32) {
    %c0_i32 = arith.constant 0 : i32
    %c0_i32_0 = arith.constant 0 : i32
    %c0_i32_1 = arith.constant 0 : i32
    return %c0_i32, %c0_i32_0 : i32, i32
  }
  func.func @transform_2(%arg0: i32) -> (i32, i32) {
    %c0_i32 = arith.constant 0 : i32
    %c0_i32_0 = arith.constant 0 : i32
    %c0_i32_1 = arith.constant 0 : i32
    return %c0_i32, %c0_i32_0 : i32, i32
  }
  func.func @transform_3(%arg0: i32) -> (i32, i32) {
    %c0_i32 = arith.constant 0 : i32
    %c0_i32_0 = arith.constant 0 : i32
    %c0_i32_1 = arith.constant 0 : i32
    return %c0_i32, %c0_i32_0 : i32, i32
  }
  func.func @transform_4(%arg0: i32) -> (i32, i32) {
    %c0_i32 = arith.constant 0 : i32
    %c0_i32_0 = arith.constant 0 : i32
    %c0_i32_1 = arith.constant 0 : i32
    return %c0_i32, %c0_i32_0 : i32, i32
  }
  func.func @transform_5(%arg0: i32) -> (i32, i32) {
    %c0_i32 = arith.constant 0 : i32
    %c0_i32_0 = arith.constant 0 : i32
    %c0_i32_1 = arith.constant 0 : i32
    return %c0_i32, %c0_i32_0 : i32, i32
  }
  func.func @transform_6(%arg0: i32) -> (i32, i32, i32) {
    %c0_i32 = arith.constant 0 : i32
    %c0_i32_0 = arith.constant 0 : i32
    %c0_i32_1 = arith.constant 0 : i32
    return %arg0, %c0_i32, %c0_i32_0 : i32, i32, i32
  }
}

module attributes {stable_mosaic.version = 11 : i64} {
  func.func @_ln_ffn_kernel(%arg0: i32, %arg1: memref<34x32xf32, #tpu.memory_space<vmem>>, %arg2: memref<1x32xf32, #tpu.memory_space<vmem>>, %arg3: memref<1x32xf32, #tpu.memory_space<vmem>>, %arg4: memref<32x64xbf16, #tpu.memory_space<vmem>>, %arg5: memref<1x64xf32, #tpu.memory_space<vmem>>, %arg6: memref<64x32xbf16, #tpu.memory_space<vmem>>, %arg7: memref<1x32xf32, #tpu.memory_space<vmem>>, %arg8: memref<34x32xf32, #tpu.memory_space<vmem>>) attributes {dimension_semantics = [#tpu.dimension_semantics<parallel>], iteration_bounds = array<i64: 1>, scalar_prefetch = 0 : i64, scratch_operands = 0 : i64, tpu.core_type = #tpu.core_type<tc>, window_params = [{transform_indices = @transform_0, window_bounds = array<i64: 34, 32>}, {pipeline_mode = #tpu.pipeline_mode<synchronous>, transform_indices = @transform_1, window_bounds = array<i64: 1, 32>}, {pipeline_mode = #tpu.pipeline_mode<synchronous>, transform_indices = @transform_2, window_bounds = array<i64: 1, 32>}, {pipeline_mode = #tpu.pipeline_mode<synchronous>, transform_indices = @transform_3, window_bounds = array<i64: 32, 64>}, {pipeline_mode = #tpu.pipeline_mode<synchronous>, transform_indices = @transform_4, window_bounds = array<i64: 1, 64>}, {pipeline_mode = #tpu.pipeline_mode<synchronous>, transform_indices = @transform_5, window_bounds = array<i64: 64, 32>}, {pipeline_mode = #tpu.pipeline_mode<synchronous>, transform_indices = @transform_6, window_bounds = array<i64: 1, 32>}, {transform_indices = @transform_7, window_bounds = array<i64: 34, 32>}]} {
    %c0 = arith.constant 0 : index
    %c0_0 = arith.constant 0 : index
    %0 = vector.load %arg1[%c0, %c0_0] : memref<34x32xf32, #tpu.memory_space<vmem>>, vector<34x32xf32>
    %c0_1 = arith.constant 0 : index
    %c0_2 = arith.constant 0 : index
    %1 = vector.load %arg2[%c0_1, %c0_2] : memref<1x32xf32, #tpu.memory_space<vmem>>, vector<1x32xf32>
    %c0_3 = arith.constant 0 : index
    %c0_4 = arith.constant 0 : index
    %2 = vector.load %arg3[%c0_3, %c0_4] : memref<1x32xf32, #tpu.memory_space<vmem>>, vector<1x32xf32>
    %cst = arith.constant dense<0.000000e+00> : vector<34xf32>
    %3 = vector.multi_reduction <add>, %0, %cst [1] : vector<34x32xf32> to vector<34xf32>
    %4 = vector.shape_cast %3 : vector<34xf32> to vector<34x1xf32>
    %cst_5 = arith.constant 3.200000e+01 : f32
    %5 = vector.broadcast %cst_5 : f32 to vector<34x1xf32>
    %6 = arith.divf %4, %5 : vector<34x1xf32>
    %7 = vector.broadcast %6 : vector<34x1xf32> to vector<34x32xf32>
    %8 = arith.subf %0, %7 : vector<34x32xf32>
    %9 = arith.mulf %8, %8 : vector<34x32xf32>
    %cst_6 = arith.constant dense<0.000000e+00> : vector<34xf32>
    %10 = vector.multi_reduction <add>, %9, %cst_6 [1] : vector<34x32xf32> to vector<34xf32>
    %11 = vector.shape_cast %10 : vector<34xf32> to vector<34x1xf32>
    %cst_7 = arith.constant 3.200000e+01 : f32
    %12 = vector.broadcast %cst_7 : f32 to vector<34x1xf32>
    %13 = arith.divf %11, %12 : vector<34x1xf32>
    %14 = vector.broadcast %6 : vector<34x1xf32> to vector<34x32xf32>
    %15 = arith.subf %0, %14 : vector<34x32xf32>
    %cst_8 = arith.constant 9.99999974E-6 : f32
    %16 = vector.broadcast %cst_8 : f32 to vector<34x1xf32>
    %17 = arith.addf %13, %16 : vector<34x1xf32>
    %18 = math.rsqrt %17 : vector<34x1xf32>
    %19 = vector.broadcast %18 : vector<34x1xf32> to vector<34x32xf32>
    %20 = arith.mulf %15, %19 : vector<34x32xf32>
    %21 = vector.broadcast %1 : vector<1x32xf32> to vector<34x32xf32>
    %22 = arith.mulf %20, %21 : vector<34x32xf32>
    %23 = vector.broadcast %2 : vector<1x32xf32> to vector<34x32xf32>
    %24 = arith.addf %22, %23 : vector<34x32xf32>
    %c0_9 = arith.constant 0 : index
    %c0_10 = arith.constant 0 : index
    %25 = vector.load %arg4[%c0_9, %c0_10] : memref<32x64xbf16, #tpu.memory_space<vmem>>, vector<32x64xbf16>
    %26 = arith.truncf %24 : vector<34x32xf32> to vector<34x32xbf16>
    %cst_11 = arith.constant dense<0.000000e+00> : vector<34x64xf32>
    %27 = tpu.matmul %26, %25, %cst_11 {dimension_numbers = #tpu.dot_dimension_numbers<[1], [0], [0], [1], [0, 0, 1, 1], [], []>} : vector<34x32xbf16>, vector<32x64xbf16>, vector<34x64xf32> -> vector<34x64xf32>
    %c0_12 = arith.constant 0 : index
    %c0_13 = arith.constant 0 : index
    %28 = vector.load %arg5[%c0_12, %c0_13] : memref<1x64xf32, #tpu.memory_space<vmem>>, vector<1x64xf32>
    %29 = vector.broadcast %28 : vector<1x64xf32> to vector<34x64xf32>
    %30 = arith.addf %27, %29 : vector<34x64xf32>
    %cst_14 = arith.constant 5.000000e-01 : f32
    %31 = vector.broadcast %cst_14 : f32 to vector<34x64xf32>
    %32 = arith.mulf %31, %30 : vector<34x64xf32>
    %cst_15 = arith.constant 4.471500e-02 : f32
    %33 = vector.broadcast %cst_15 : f32 to vector<34x64xf32>
    %34 = arith.mulf %33, %30 : vector<34x64xf32>
    %35 = arith.mulf %34, %30 : vector<34x64xf32>
    %36 = arith.mulf %35, %30 : vector<34x64xf32>
    %37 = arith.addf %30, %36 : vector<34x64xf32>
    %cst_16 = arith.constant 0.797884583 : f32
    %38 = vector.broadcast %cst_16 : f32 to vector<34x64xf32>
    %39 = arith.mulf %38, %37 : vector<34x64xf32>
    %40 = math.tanh %39 : vector<34x64xf32>
    %cst_17 = arith.constant 1.000000e+00 : f32
    %41 = vector.broadcast %cst_17 : f32 to vector<34x64xf32>
    %42 = arith.addf %41, %40 : vector<34x64xf32>
    %43 = arith.mulf %32, %42 : vector<34x64xf32>
    %c0_18 = arith.constant 0 : index
    %c0_19 = arith.constant 0 : index
    %44 = vector.load %arg6[%c0_18, %c0_19] : memref<64x32xbf16, #tpu.memory_space<vmem>>, vector<64x32xbf16>
    %45 = arith.truncf %43 : vector<34x64xf32> to vector<34x64xbf16>
    %cst_20 = arith.constant dense<0.000000e+00> : vector<34x32xf32>
    %46 = tpu.matmul %45, %44, %cst_20 {dimension_numbers = #tpu.dot_dimension_numbers<[1], [0], [0], [1], [0, 0, 1, 1], [], []>} : vector<34x64xbf16>, vector<64x32xbf16>, vector<34x32xf32> -> vector<34x32xf32>
    %c0_21 = arith.constant 0 : index
    %c0_22 = arith.constant 0 : index
    %47 = vector.load %arg7[%c0_21, %c0_22] : memref<1x32xf32, #tpu.memory_space<vmem>>, vector<1x32xf32>
    %48 = vector.broadcast %47 : vector<1x32xf32> to vector<34x32xf32>
    %49 = arith.addf %46, %48 : vector<34x32xf32>
    %50 = arith.addf %49, %0 : vector<34x32xf32>
    %c0_23 = arith.constant 0 : index
    %c0_24 = arith.constant 0 : index
    %51 = vector.load %arg8[%c0_23, %c0_24] : memref<34x32xf32, #tpu.memory_space<vmem>>, vector<34x32xf32>
    tpu.vector_store %arg8[%c0_23, %c0_24], %50 {strides = array<i32>} : memref<34x32xf32, #tpu.memory_space<vmem>>, vector<34x32xf32>,
    return
  }
  func.func @transform_0(%arg0: i32) -> (i32, i32) {
    %c0_i32 = arith.constant 0 : i32
    %c0_i32_0 = arith.constant 0 : i32
    return %arg0, %c0_i32 : i32, i32
  }
  func.func @transform_1(%arg0: i32) -> (i32, i32) {
    %c0_i32 = arith.constant 0 : i32
    %c0_i32_0 = arith.constant 0 : i32
    %c0_i32_1 = arith.constant 0 : i32
    return %c0_i32, %c0_i32_0 : i32, i32
  }
  func.func @transform_2(%arg0: i32) -> (i32, i32) {
    %c0_i32 = arith.constant 0 : i32
    %c0_i32_0 = arith.constant 0 : i32
    %c0_i32_1 = arith.constant 0 : i32
    return %c0_i32, %c0_i32_0 : i32, i32
  }
  func.func @transform_3(%arg0: i32) -> (i32, i32) {
    %c0_i32 = arith.constant 0 : i32
    %c0_i32_0 = arith.constant 0 : i32
    %c0_i32_1 = arith.constant 0 : i32
    return %c0_i32, %c0_i32_0 : i32, i32
  }
  func.func @transform_4(%arg0: i32) -> (i32, i32) {
    %c0_i32 = arith.constant 0 : i32
    %c0_i32_0 = arith.constant 0 : i32
    %c0_i32_1 = arith.constant 0 : i32
    return %c0_i32, %c0_i32_0 : i32, i32
  }
  func.func @transform_5(%arg0: i32) -> (i32, i32) {
    %c0_i32 = arith.constant 0 : i32
    %c0_i32_0 = arith.constant 0 : i32
    %c0_i32_1 = arith.constant 0 : i32
    return %c0_i32, %c0_i32_0 : i32, i32
  }
  func.func @transform_6(%arg0: i32) -> (i32, i32) {
    %c0_i32 = arith.constant 0 : i32
    %c0_i32_0 = arith.constant 0 : i32
    %c0_i32_1 = arith.constant 0 : i32
    return %c0_i32, %c0_i32_0 : i32, i32
  }
  func.func @transform_7(%arg0: i32) -> (i32, i32) {
    %c0_i32 = arith.constant 0 : i32
    %c0_i32_0 = arith.constant 0 : i32
    return %arg0, %c0_i32 : i32, i32
  }
}

module attributes {stable_mosaic.version = 11 : i64} {
  func.func @_ln_matmul_bias_kernel(%arg0: i32, %arg1: memref<2x32xf32, #tpu.memory_space<vmem>>, %arg2: memref<1x32xf32, #tpu.memory_space<vmem>>, %arg3: memref<1x32xf32, #tpu.memory_space<vmem>>, %arg4: memref<32x10xbf16, #tpu.memory_space<vmem>>, %arg5: memref<1x10xf32, #tpu.memory_space<vmem>>, %arg6: memref<2x10xf32, #tpu.memory_space<vmem>>) attributes {dimension_semantics = [#tpu.dimension_semantics<parallel>], iteration_bounds = array<i64: 1>, scalar_prefetch = 0 : i64, scratch_operands = 0 : i64, tpu.core_type = #tpu.core_type<tc>, window_params = [{transform_indices = @transform_0, window_bounds = array<i64: 2, 32>}, {pipeline_mode = #tpu.pipeline_mode<synchronous>, transform_indices = @transform_1, window_bounds = array<i64: 1, 32>}, {pipeline_mode = #tpu.pipeline_mode<synchronous>, transform_indices = @transform_2, window_bounds = array<i64: 1, 32>}, {pipeline_mode = #tpu.pipeline_mode<synchronous>, transform_indices = @transform_3, window_bounds = array<i64: 32, 10>}, {pipeline_mode = #tpu.pipeline_mode<synchronous>, transform_indices = @transform_4, window_bounds = array<i64: 1, 10>}, {transform_indices = @transform_5, window_bounds = array<i64: 2, 10>}]} {
    %c0 = arith.constant 0 : index
    %c0_0 = arith.constant 0 : index
    %0 = vector.load %arg1[%c0, %c0_0] : memref<2x32xf32, #tpu.memory_space<vmem>>, vector<2x32xf32>
    %c0_1 = arith.constant 0 : index
    %c0_2 = arith.constant 0 : index
    %1 = vector.load %arg2[%c0_1, %c0_2] : memref<1x32xf32, #tpu.memory_space<vmem>>, vector<1x32xf32>
    %c0_3 = arith.constant 0 : index
    %c0_4 = arith.constant 0 : index
    %2 = vector.load %arg3[%c0_3, %c0_4] : memref<1x32xf32, #tpu.memory_space<vmem>>, vector<1x32xf32>
    %cst = arith.constant dense<0.000000e+00> : vector<2xf32>
    %3 = vector.multi_reduction <add>, %0, %cst [1] : vector<2x32xf32> to vector<2xf32>
    %4 = vector.shape_cast %3 : vector<2xf32> to vector<2x1xf32>
    %cst_5 = arith.constant 3.200000e+01 : f32
    %5 = vector.broadcast %cst_5 : f32 to vector<2x1xf32>
    %6 = arith.divf %4, %5 : vector<2x1xf32>
    %7 = vector.broadcast %6 : vector<2x1xf32> to vector<2x32xf32>
    %8 = arith.subf %0, %7 : vector<2x32xf32>
    %9 = arith.mulf %8, %8 : vector<2x32xf32>
    %cst_6 = arith.constant dense<0.000000e+00> : vector<2xf32>
    %10 = vector.multi_reduction <add>, %9, %cst_6 [1] : vector<2x32xf32> to vector<2xf32>
    %11 = vector.shape_cast %10 : vector<2xf32> to vector<2x1xf32>
    %cst_7 = arith.constant 3.200000e+01 : f32
    %12 = vector.broadcast %cst_7 : f32 to vector<2x1xf32>
    %13 = arith.divf %11, %12 : vector<2x1xf32>
    %14 = vector.broadcast %6 : vector<2x1xf32> to vector<2x32xf32>
    %15 = arith.subf %0, %14 : vector<2x32xf32>
    %cst_8 = arith.constant 9.99999974E-6 : f32
    %16 = vector.broadcast %cst_8 : f32 to vector<2x1xf32>
    %17 = arith.addf %13, %16 : vector<2x1xf32>
    %18 = math.rsqrt %17 : vector<2x1xf32>
    %19 = vector.broadcast %18 : vector<2x1xf32> to vector<2x32xf32>
    %20 = arith.mulf %15, %19 : vector<2x32xf32>
    %21 = vector.broadcast %1 : vector<1x32xf32> to vector<2x32xf32>
    %22 = arith.mulf %20, %21 : vector<2x32xf32>
    %23 = vector.broadcast %2 : vector<1x32xf32> to vector<2x32xf32>
    %24 = arith.addf %22, %23 : vector<2x32xf32>
    %c0_9 = arith.constant 0 : index
    %c0_10 = arith.constant 0 : index
    %25 = vector.load %arg4[%c0_9, %c0_10] : memref<32x10xbf16, #tpu.memory_space<vmem>>, vector<32x10xbf16>
    %26 = arith.truncf %24 : vector<2x32xf32> to vector<2x32xbf16>
    %cst_11 = arith.constant dense<0.000000e+00> : vector<2x10xf32>
    %27 = tpu.matmul %26, %25, %cst_11 {dimension_numbers = #tpu.dot_dimension_numbers<[1], [0], [0], [1], [0, 0, 1, 1], [], []>} : vector<2x32xbf16>, vector<32x10xbf16>, vector<2x10xf32> -> vector<2x10xf32>
    %c0_12 = arith.constant 0 : index
    %c0_13 = arith.constant 0 : index
    %28 = vector.load %arg5[%c0_12, %c0_13] : memref<1x10xf32, #tpu.memory_space<vmem>>, vector<1x10xf32>
    %29 = vector.broadcast %28 : vector<1x10xf32> to vector<2x10xf32>
    %30 = arith.addf %27, %29 : vector<2x10xf32>
    %c0_14 = arith.constant 0 : index
    %c0_15 = arith.constant 0 : index
    %31 = vector.load %arg6[%c0_14, %c0_15] : memref<2x10xf32, #tpu.memory_space<vmem>>, vector<2x10xf32>
    tpu.vector_store %arg6[%c0_14, %c0_15], %30 {strides = array<i32>} : memref<2x10xf32, #tpu.memory_space<vmem>>, vector<2x10xf32>,
    return
  }
  func.func @transform_0(%arg0: i32) -> (i32, i32) {
    %c0_i32 = arith.constant 0 : i32
    %c0_i32_0 = arith.constant 0 : i32
    return %arg0, %c0_i32 : i32, i32
  }
  func.func @transform_1(%arg0: i32) -> (i32, i32) {
    %c0_i32 = arith.constant 0 : i32
    %c0_i32_0 = arith.constant 0 : i32
    %c0_i32_1 = arith.constant 0 : i32
    return %c0_i32, %c0_i32_0 : i32, i32
  }
  func.func @transform_2(%arg0: i32) -> (i32, i32) {
    %c0_i32 = arith.constant 0 : i32
    %c0_i32_0 = arith.constant 0 : i32
    %c0_i32_1 = arith.constant 0 : i32
    return %c0_i32, %c0_i32_0 : i32, i32
  }
  func.func @transform_3(%arg0: i32) -> (i32, i32) {
    %c0_i32 = arith.constant 0 : i32
    %c0_i32_0 = arith.constant 0 : i32
    %c0_i32_1 = arith.constant 0 : i32
    return %c0_i32, %c0_i32_0 : i32, i32
  }
  func.func @transform_4(%arg0: i32) -> (i32, i32) {
    %c0_i32 = arith.constant 0 : i32
    %c0_i32_0 = arith.constant 0 : i32
    %c0_i32_1 = arith.constant 0 : i32
    return %c0_i32, %c0_i32_0 : i32, i32
  }
  func.func @transform_5(%arg0: i32) -> (i32, i32) {
    %c0_i32 = arith.constant 0 : i32
    %c0_i32_0 = arith.constant 0 : i32
    return %arg0, %c0_i32 : i32, i32
  }
}

</mosaic_0001>

<llo_original>
// kernel: vit_forward.6
$region0: #{vit_forward.6}
  #allocation0 [shape = 'u32[]', space=smem, size = 0x4, offset = 0x4, fixed_abs, tag = 'smem constant byte address 0x4 - core index']
  #allocation1 [shape = 'u32[72,128]{1,0:T(1,128)}', space=vmem, size = 0x9000, scoped, tag = 'internal scratch']
  %s0 = inlined_call_operand.vmem [shape: f32[32,48], index: 0, kind: input, shape index: {}]
  %s1 = inlined_call_operand.vmem [shape: bf16[48,32], index: 1, kind: input, shape index: {}]
  %s2 = inlined_call_operand.vmem [shape: f32[1,32], index: 2, kind: input, shape index: {}]
  %s3 = inlined_call_operand.vmem [shape: f32[32,32], index: 3, kind: output, shape index: {}]
  %s4 = sld [smem:[#allocation0]]
  $region22: #{vit_forward.6} parent=0
    _
  %s6 = ssub.s32 1, %s4
  %s7 = scalar_select 0, %s6, %s4
  // Predicated region
  $region2: #{vit_forward.6} parent=0 // pred_check
    _
  $region3: #{vit_forward.6} parent=0 // pred_check_branch
    %9 = sbr.rel (0) target = $region5
  $region4: #{vit_forward.6} parent=0 // pred_region
    _
  $region5: #{vit_forward.6} parent=0 // pred_fallthru
    _
  // Predicated region
  $region6: #{vit_forward.6} parent=0 // pred_check
    _
  $region7: #{vit_forward.6} parent=0 // pred_check_branch
    %11 = sbr.rel (0) target = $region9
  $region8: #{vit_forward.6} parent=0 // pred_region
    _
  $region9: #{vit_forward.6} parent=0 // pred_fallthru
    _
  // Predicated region
  $region10: #{vit_forward.6} parent=0 // pred_check
    _
  $region11: #{vit_forward.6} parent=0 // pred_check_branch
    %13 = sbr.rel (0) target = $region13
  $region12: #{vit_forward.6} parent=0 // pred_region
    _
  $region13: #{vit_forward.6} parent=0 // pred_fallthru
    _
  %v15 = vld [vmem:[%s0] sm:$0xff]
  %v16 = vld [vmem:[%s0 + $0x8] sm:$0xff]
  %v17 = vld [vmem:[%s0 + $0x10] sm:$0xff]
  %v18 = vld [vmem:[%s0 + $0x18] sm:$0xff]
  %v19 = vld [vmem:[%s1] sm:$0xf]
  %v20 = vld [vmem:[%s1 + $0x4] sm:$0xf]
  %v21 = vld [vmem:[%s1 + $0x8] sm:$0xf]
  %v22 = vld [vmem:[%s1 + $0xc] sm:$0xf]
  %v23 = vld [vmem:[%s1 + $0x10] sm:$0xf]
  %v24 = vld [vmem:[%s1 + $0x14] sm:$0xf]
  %v25 = vpack.c.bf16 %v16, %v15
  %v26 = vpack.c.bf16 %v18, %v17
  %v27 = vld [vmem:[%s2] sm:$0x1]
  %v29 = vperm.slane %v27, 0
  %v37 = vunpack.c.l.b16 %v19
  %v38 = vunpack.c.l.b16 %v20
  %v39 = vunpack.c.l.b16 %v21
  %v40 = vunpack.c.l.b16 %v22
  %v41 = vunpack.c.l.b16 %v23
  %v42 = vunpack.c.l.b16 %v24
  %v43 = vpack.c.b16 %v38, %v37
  %v44 = vpack.c.b16 %v40, %v39
  %v45 = vpack.c.b16 %v42, %v41
  %vm49 = vcmask 392192
  %v51 = vsel %vm49, %v25, 0
  %v54 = vsel %vm49, %v26, 0
  %56 = vmatpush.bf16.msra.mxu0 0
  %57 = vmatpush.bf16.msra.mxu0 0
  %58 = vmatpush.bf16.msra.mxu0 0
  %59 = vmatpush.bf16.msra.mxu0 0
  %60 = vmatpush.bf16.msra.mxu0 0
  %61 = vmatpush.bf16.msra.mxu0 %v45
  %62 = vmatpush.bf16.msra.mxu0 %v44
  %63 = vmatpush.bf16.msra.mxu0 %v43
  %64 = vmatmul.bf16.gmra.mxu0 %v51
  %v65 = vpop.f32.mrf.mxu0
  %v66 = vadd.f32 %v29, %v65
  %v67 = vpop.f32.mrf.mxu0
  %v68 = vadd.f32 %v29, %v67
  %69 = vmatmul.bf16.gmra.mxu0 %v54
  %v70 = vpop.f32.mrf.mxu0
  %v71 = vadd.f32 %v29, %v70
  %v72 = vpop.f32.mrf.mxu0
  %v73 = vadd.f32 %v29, %v72
  %74 = vdwg.mxu0
  %vm75 = vcmask 261120
  %76 = vst.msk [vmem:[%s3] sm:$0xff] %vm75, %v66
  %77 = vst.msk [vmem:[%s3 + $0x8] sm:$0xff] %vm75, %v68
  %78 = vst.msk [vmem:[%s3 + $0x10] sm:$0xff] %vm75, %v71
  %79 = vst.msk [vmem:[%s3 + $0x18] sm:$0xff] %vm75, %v73
  // Predicated region
  $region14: #{vit_forward.6} parent=0 // pred_check
    _
  $region15: #{vit_forward.6} parent=0 // pred_check_branch
    %81 = sbr.rel (0) target = $region17
  $region16: #{vit_forward.6} parent=0 // pred_region
    _
  $region17: #{vit_forward.6} parent=0 // pred_fallthru
    _
  // Predicated region
  $region18: #{vit_forward.6} parent=0 // pred_check
    _
  $region19: #{vit_forward.6} parent=0 // pred_check_branch
    %83 = sbr.rel (0) target = $region21
  $region20: #{vit_forward.6} parent=0 // pred_region
    _
  $region21: #{vit_forward.6} parent=0 // pred_fallthru
    _

// kernel: vit_forward.8
$region0: #{vit_forward.8}
  #allocation0 [shape = 'u32[]', space=smem, size = 0x4, offset = 0x4, fixed_abs, tag = 'smem constant byte address 0x4 - core index']
  #allocation1 [shape = 'u32[72,128]{1,0:T(1,128)}', space=vmem, size = 0x9000, scoped, tag = 'internal scratch']
  %s0 = inlined_call_operand.vmem [shape: f32[34,32], index: 0, kind: input, shape index: {}]
  %s1 = inlined_call_operand.vmem [shape: f32[1,32], index: 1, kind: input, shape index: {}]
  %s2 = inlined_call_operand.vmem [shape: f32[1,32], index: 2, kind: input, shape index: {}]
  %s3 = inlined_call_operand.vmem [shape: bf16[32,64], index: 3, kind: input, shape index: {}]
  %s4 = inlined_call_operand.vmem [shape: f32[1,64], index: 4, kind: input, shape index: {}]
  %s5 = inlined_call_operand.vmem [shape: bf16[64,32], index: 5, kind: input, shape index: {}]
  %s6 = inlined_call_operand.vmem [shape: f32[1,32], index: 6, kind: input, shape index: {}]
  %s7 = inlined_call_operand.vmem [shape: f32[34,32], index: 7, kind: output, shape index: {}]
  %s8 = sld [smem:[#allocation0]]
  $region38: #{vit_forward.8} parent=0
    _
  %s10 = ssub.s32 1, %s8
  %s11 = scalar_select 0, %s10, %s8
  // Predicated region
  $region2: #{vit_forward.8} parent=0 // pred_check
    _
  $region3: #{vit_forward.8} parent=0 // pred_check_branch
    %13 = sbr.rel (0) target = $region5
  $region4: #{vit_forward.8} parent=0 // pred_region
    _
  $region5: #{vit_forward.8} parent=0 // pred_fallthru
    _
  // Predicated region
  $region6: #{vit_forward.8} parent=0 // pred_check
    _
  $region7: #{vit_forward.8} parent=0 // pred_check_branch
    %15 = sbr.rel (0) target = $region9
  $region8: #{vit_forward.8} parent=0 // pred_region
    _
  $region9: #{vit_forward.8} parent=0 // pred_fallthru
    _
  // Predicated region
  $region10: #{vit_forward.8} parent=0 // pred_check
    _
  $region11: #{vit_forward.8} parent=0 // pred_check_branch
    %17 = sbr.rel (0) target = $region13
  $region12: #{vit_forward.8} parent=0 // pred_region
    _
  $region13: #{vit_forward.8} parent=0 // pred_fallthru
    _
  // Predicated region
  $region14: #{vit_forward.8} parent=0 // pred_check
    _
  $region15: #{vit_forward.8} parent=0 // pred_check_branch
    %19 = sbr.rel (0) target = $region17
  $region16: #{vit_forward.8} parent=0 // pred_region
    _
  $region17: #{vit_forward.8} parent=0 // pred_fallthru
    _
  // Predicated region
  $region18: #{vit_forward.8} parent=0 // pred_check
    _
  $region19: #{vit_forward.8} parent=0 // pred_check_branch
    %21 = sbr.rel (0) target = $region21
  $region20: #{vit_forward.8} parent=0 // pred_region
    _
  $region21: #{vit_forward.8} parent=0 // pred_fallthru
    _
  // Predicated region
  $region22: #{vit_forward.8} parent=0 // pred_check
    _
  $region23: #{vit_forward.8} parent=0 // pred_check_branch
    %23 = sbr.rel (0) target = $region25
  $region24: #{vit_forward.8} parent=0 // pred_region
    _
  $region25: #{vit_forward.8} parent=0 // pred_fallthru
    _
  // Predicated region
  $region26: #{vit_forward.8} parent=0 // pred_check
    _
  $region27: #{vit_forward.8} parent=0 // pred_check_branch
    %25 = sbr.rel (0) target = $region29
  $region28: #{vit_forward.8} parent=0 // pred_region
    _
  $region29: #{vit_forward.8} parent=0 // pred_fallthru
    _
  %v27 = vld [vmem:[%s0] sm:$0xff]
  %v28 = vld [vmem:[%s0 + $0x8] sm:$0xff]
  %v29 = vld [vmem:[%s0 + $0x10] sm:$0xff]
  %v30 = vld [vmem:[%s0 + $0x18] sm:$0xff]
  %v31 = vld [vmem:[%s0 + $0x20] sm:$0x3]
  %v32 = vld [vmem:[%s1] sm:$0x1]
  %v33 = vld [vmem:[%s2] sm:$0x1]
  %vm34 = vcmask 261120
  %v35 = vsel %vm34, %v27, 0.0
  %36 = vadd.xlane.f32.xlu0 %v35
  %v37 = vpop.xlane.xlu0 %36
  %v38 = vsel %vm34, %v28, 0.0
  %39 = vadd.xlane.f32.xlu0 %v38
  %v40 = vpop.xlane.xlu0 %39
  %v41 = vsel %vm34, %v29, 0.0
  %42 = vadd.xlane.f32.xlu0 %v41
  %v43 = vpop.xlane.xlu0 %42
  %v44 = vsel %vm34, %v30, 0.0
  %45 = vadd.xlane.f32.xlu0 %v44
  %v46 = vpop.xlane.xlu0 %45
  %vm47 = vcmask 254976
  %v48 = vsel %vm47, %v31, 0.0
  %49 = vadd.xlane.f32.xlu0 %v48
  %v50 = vpop.xlane.xlu0 %49
  %v51 = vrcp.pop 32.0
  %v52 = vmul.f32 32.0, %v51
  %v53 = vsub.f32 1.0, %v52
  %v54 = vmul.f32 %v51, %v53
  %v55 = vadd.f32 %v51, %v54
  %vm56 = vweird.f32 %v51
  %v57 = vsel %vm56, %v51, %v55
  %v58 = vmul.f32 %v37, %v57
  %v59 = vmul.f32 %v40, %v57
  %v60 = vmul.f32 %v43, %v57
  %v61 = vmul.f32 %v46, %v57
  %v62 = vmul.f32 %v50, %v57
  %v63 = vsub.f32 %v27, %v58
  %v64 = vsub.f32 %v28, %v59
  %v65 = vsub.f32 %v29, %v60
  %v66 = vsub.f32 %v30, %v61
  %v67 = vsub.f32 %v31, %v62
  %v68 = vmul.f32 %v63, %v63
  %v69 = vmul.f32 %v64, %v64
  %v70 = vmul.f32 %v65, %v65
  %v71 = vmul.f32 %v66, %v66
  %v72 = vmul.f32 %v67, %v67
  %v73 = vsel %vm34, %v68, 0.0
  %74 = vadd.xlane.f32.xlu0 %v73
  %v75 = vpop.xlane.xlu0 %74
  %v76 = vsel %vm34, %v69, 0.0
  %77 = vadd.xlane.f32.xlu0 %v76
  %v78 = vpop.xlane.xlu0 %77
  %v79 = vsel %vm34, %v70, 0.0
  %80 = vadd.xlane.f32.xlu0 %v79
  %v81 = vpop.xlane.xlu0 %80
  %v82 = vsel %vm34, %v71, 0.0
  %83 = vadd.xlane.f32.xlu0 %v82
  %v84 = vpop.xlane.xlu0 %83
  %v85 = vsel %vm47, %v72, 0.0
  %86 = vadd.xlane.f32.xlu0 %v85
  %v87 = vpop.xlane.xlu0 %86
  %v88 = vmul.f32 %v75, %v57
  %v89 = vmul.f32 %v78, %v57
  %v90 = vmul.f32 %v81, %v57
  %v91 = vmul.f32 %v84, %v57
  %v92 = vmul.f32 %v87, %v57
  %v93 = vadd.f32 %v88, 1e-05
  %v94 = vadd.f32 %v89, 1e-05
  %v95 = vadd.f32 %v90, 1e-05
  %v96 = vadd.f32 %v91, 1e-05
  %v97 = vadd.f32 %v92, 1e-05
  %v98 = vrsqrt.pop %v93
  %v99 = vmul.f32 %v98, %v93
  %v100 = vmul.f32 %v99, %v98
  %v101 = vmul.f32 0.5, %v100
  %v102 = vsub.f32 1.5, %v101
  %v103 = vmul.f32 %v98, %v102
  %vm104 = vweird.f32 %v93
  %vm105 = vweird.f32 %v98
  %vm106 = vmor %vm104, %vm105
  %v107 = vsel %vm106, %v98, %v103
  %v108 = vrsqrt.pop %v94
  %v109 = vmul.f32 %v108, %v94
  %v110 = vmul.f32 %v109, %v108
  %v111 = vmul.f32 0.5, %v110
  %v112 = vsub.f32 1.5, %v111
  %v113 = vmul.f32 %v108, %v112
  %vm114 = vweird.f32 %v94
  %vm115 = vweird.f32 %v108
  %vm116 = vmor %vm114, %vm115
  %v117 = vsel %vm116, %v108, %v113
  %v118 = vrsqrt.pop %v95
  %v119 = vmul.f32 %v118, %v95
  %v120 = vmul.f32 %v119, %v118
  %v121 = vmul.f32 0.5, %v120
  %v122 = vsub.f32 1.5, %v121
  %v123 = vmul.f32 %v118, %v122
  %vm124 = vweird.f32 %v95
  %vm125 = vweird.f32 %v118
  %vm126 = vmor %vm124, %vm125
  %v127 = vsel %vm126, %v118, %v123
  %v128 = vrsqrt.pop %v96
  %v129 = vmul.f32 %v128, %v96
  %v130 = vmul.f32 %v129, %v128
  %v131 = vmul.f32 0.5, %v130
  %v132 = vsub.f32 1.5, %v131
  %v133 = vmul.f32 %v128, %v132
  %vm134 = vweird.f32 %v96
  %vm135 = vweird.f32 %v128
  %vm136 = vmor %vm134, %vm135
  %v137 = vsel %vm136, %v128, %v133
  %v138 = vrsqrt.pop %v97
  %v139 = vmul.f32 %v138, %v97
  %v140 = vmul.f32 %v139, %v138
  %v141 = vmul.f32 0.5, %v140
  %v142 = vsub.f32 1.5, %v141
  %v143 = vmul.f32 %v138, %v142
  %vm144 = vweird.f32 %v97
  %vm145 = vweird.f32 %v138
  %vm146 = vmor %vm144, %vm145
  %v147 = vsel %vm146, %v138, %v143
  %v148 = vmul.f32 %v63, %v107
  %v149 = vmul.f32 %v64, %v117
  %v150 = vmul.f32 %v65, %v127
  %v151 = vmul.f32 %v66, %v137
  %v152 = vmul.f32 %v67, %v147
  %v154 = vperm.slane %v32, 0
  %v156 = vmul.f32 %v148, %v154
  %v157 = vmul.f32 %v149, %v154
  %v158 = vmul.f32 %v150, %v154
  %v159 = vmul.f32 %v151, %v154
  %v160 = vmul.f32 %v152, %v154
  %v162 = vperm.slane %v33, 0
  %v164 = vadd.f32 %v156, %v162
  %v165 = vadd.f32 %v157, %v162
  %v166 = vadd.f32 %v158, %v162
  %v167 = vadd.f32 %v159, %v162
  %v168 = vadd.f32 %v160, %v162
  %v169 = vld [vmem:[%s3] sm:$0xf]
  %v170 = vld [vmem:[%s3 + $0x4] sm:$0xf]
  %v171 = vld [vmem:[%s3 + $0x8] sm:$0xf]
  %v172 = vld [vmem:[%s3 + $0xc] sm:$0xf]
  %v173 = vpack.c.bf16 %v165, %v164
  %v174 = vpack.c.bf16 %v167, %v166
  %v175 = vpack.c.bf16 %v168, %v168
  %v176 = vld [vmem:[%s4] sm:$0x1]
  %v178 = vperm.slane %v176, 0
  %v184 = vunpack.c.l.b16 %v169
  %v185 = vunpack.c.l.b16 %v170
  %v186 = vunpack.c.l.b16 %v171
  %v187 = vunpack.c.l.b16 %v172
  %v188 = vpack.c.b16 %v185, %v184
  %v189 = vpack.c.b16 %v187, %v186
  %v193 = vsel %vm34, %v173, 0
  %v196 = vsel %vm34, %v174, 0
  %v199 = vsel %vm34, %v175, 0
  %201 = vmatpush.bf16.msra.mxu0 0
  %202 = vmatpush.bf16.msra.mxu0 0
  %203 = vmatpush.bf16.msra.mxu0 0
  %204 = vmatpush.bf16.msra.mxu0 0
  %205 = vmatpush.bf16.msra.mxu0 0
  %206 = vmatpush.bf16.msra.mxu0 0
  %207 = vmatpush.bf16.msra.mxu0 %v189
  %208 = vmatpush.bf16.msra.mxu0 %v188
  %209 = vmatmul.bf16.gmra.mxu0 %v193
  %v210 = vpop.f32.mrf.mxu0
  %v211 = vadd.f32 %v178, %v210
  %v212 = vpop.f32.mrf.mxu0
  %v213 = vadd.f32 %v178, %v212
  %214 = vmatmul.bf16.gmra.mxu0 %v196
  %v215 = vpop.f32.mrf.mxu0
  %v216 = vadd.f32 %v178, %v215
  %v217 = vpop.f32.mrf.mxu0
  %v218 = vadd.f32 %v178, %v217
  %219 = vmatmul.bf16.gmra.mxu0 %v199
  %v220 = vpop.f32.mrf.mxu0
  %v221 = vadd.f32 %v178, %v220
  %v222 = vpop.f32.mrf.mxu0
  %223 = vdwg.mxu0
  %v224 = vmul.f32 %v211, 0.5
  %v225 = vmul.f32 %v213, 0.5
  %v226 = vmul.f32 %v216, 0.5
  %v227 = vmul.f32 %v218, 0.5
  %v228 = vmul.f32 %v221, 0.5
  %v229 = vmul.f32 %v211, 0.044715
  %v230 = vmul.f32 %v213, 0.044715
  %v231 = vmul.f32 %v216, 0.044715
  %v232 = vmul.f32 %v218, 0.044715
  %v233 = vmul.f32 %v221, 0.044715
  %v234 = vmul.f32 %v229, %v211
  %v235 = vmul.f32 %v230, %v213
  %v236 = vmul.f32 %v231, %v216
  %v237 = vmul.f32 %v232, %v218
  %v238 = vmul.f32 %v233, %v221
  %v239 = vmul.f32 %v234, %v211
  %v240 = vmul.f32 %v235, %v213
  %v241 = vmul.f32 %v236, %v216
  %v242 = vmul.f32 %v237, %v218
  %v243 = vmul.f32 %v238, %v221
  %v244 = vadd.f32 %v211, %v239
  %v245 = vadd.f32 %v213, %v240
  %v246 = vadd.f32 %v216, %v241
  %v247 = vadd.f32 %v218, %v242
  %v248 = vadd.f32 %v221, %v243
  %v249 = vmul.f32 %v244, 0.7978846
  %v250 = vmul.f32 %v245, 0.7978846
  %v251 = vmul.f32 %v246, 0.7978846
  %v252 = vmul.f32 %v247, 0.7978846
  %v253 = vmul.f32 %v248, 0.7978846
  %v254 = vtanh.pop %v249
  %v255 = vtanh.pop %v250
  %v256 = vtanh.pop %v251
  %v257 = vtanh.pop %v252
  %v258 = vtanh.pop %v253
  %v259 = vadd.f32 %v254, 1.0
  %v260 = vadd.f32 %v255, 1.0
  %v261 = vadd.f32 %v256, 1.0
  %v262 = vadd.f32 %v257, 1.0
  %v263 = vadd.f32 %v258, 1.0
  %v264 = vmul.f32 %v224, %v259
  %v265 = vmul.f32 %v225, %v260
  %v266 = vmul.f32 %v226, %v261
  %v267 = vmul.f32 %v227, %v262
  %v268 = vmul.f32 %v228, %v263
  %v269 = vld [vmem:[%s5] sm:$0xf]
  %v270 = vld [vmem:[%s5 + $0x4] sm:$0xf]
  %v271 = vld [vmem:[%s5 + $0x8] sm:$0xf]
  %v272 = vld [vmem:[%s5 + $0xc] sm:$0xf]
  %v273 = vld [vmem:[%s5 + $0x10] sm:$0xf]
  %v274 = vld [vmem:[%s5 + $0x14] sm:$0xf]
  %v275 = vld [vmem:[%s5 + $0x18] sm:$0xf]
  %v276 = vld [vmem:[%s5 + $0x1c] sm:$0xf]
  %v277 = vpack.c.bf16 %v265, %v264
  %v278 = vpack.c.bf16 %v267, %v266
  %v279 = vpack.c.bf16 %v268, %v268
  %v280 = vld [vmem:[%s6] sm:$0x1]
  %v282 = vperm.slane %v280, 0
  %v292 = vunpack.c.l.b16 %v269
  %v293 = vunpack.c.l.b16 %v270
  %v294 = vunpack.c.l.b16 %v271
  %v295 = vunpack.c.l.b16 %v272
  %v296 = vunpack.c.l.b16 %v273
  %v297 = vunpack.c.l.b16 %v274
  %v298 = vunpack.c.l.b16 %v275
  %v299 = vunpack.c.l.b16 %v276
  %v300 = vpack.c.b16 %v293, %v292
  %v301 = vpack.c.b16 %v295, %v294
  %v302 = vpack.c.b16 %v297, %v296
  %v303 = vpack.c.b16 %v299, %v298
  %vm308 = vcmask 523264
  %v310 = vsel %vm308, %v277, 0
  %v313 = vsel %vm308, %v278, 0
  %v316 = vsel %vm308, %v279, 0
  %318 = vmatpush.bf16.msra.mxu0 0
  %319 = vmatpush.bf16.msra.mxu0 0
  %320 = vmatpush.bf16.msra.mxu0 0
  %321 = vmatpush.bf16.msra.mxu0 0
  %322 = vmatpush.bf16.msra.mxu0 %v303
  %323 = vmatpush.bf16.msra.mxu0 %v302
  %324 = vmatpush.bf16.msra.mxu0 %v301
  %325 = vmatpush.bf16.msra.mxu0 %v300
  %326 = vmatmul.bf16.gmra.mxu0 %v310
  %v327 = vpop.f32.mrf.mxu0
  %v328 = vadd.f32 %v282, %v327
  %v329 = vpop.f32.mrf.mxu0
  %v330 = vadd.f32 %v282, %v329
  %331 = vmatmul.bf16.gmra.mxu0 %v313
  %v332 = vpop.f32.mrf.mxu0
  %v333 = vadd.f32 %v282, %v332
  %v334 = vpop.f32.mrf.mxu0
  %v335 = vadd.f32 %v282, %v334
  %336 = vmatmul.bf16.gmra.mxu0 %v316
  %v337 = vpop.f32.mrf.mxu0
  %v338 = vadd.f32 %v282, %v337
  %v339 = vpop.f32.mrf.mxu0
  %340 = vdwg.mxu0
  %v341 = vadd.f32 %v328, %v27
  %v342 = vadd.f32 %v330, %v28
  %v343 = vadd.f32 %v333, %v29
  %v344 = vadd.f32 %v335, %v30
  %v345 = vadd.f32 %v338, %v31
  %346 = vst.msk [vmem:[%s7] sm:$0xff] %vm34, %v341
  %347 = vst.msk [vmem:[%s7 + $0x8] sm:$0xff] %vm34, %v342
  %348 = vst.msk [vmem:[%s7 + $0x10] sm:$0xff] %vm34, %v343
  %349 = vst.msk [vmem:[%s7 + $0x18] sm:$0xff] %vm34, %v344
  %350 = vst.msk [vmem:[%s7 + $0x20] sm:$0x3] %vm47, %v345
  // Predicated region
  $region30: #{vit_forward.8} parent=0 // pred_check
    _
  $region31: #{vit_forward.8} parent=0 // pred_check_branch
    %352 = sbr.rel (0) target = $region33
  $region32: #{vit_forward.8} parent=0 // pred_region
    _
  $region33: #{vit_forward.8} parent=0 // pred_fallthru
    _
  // Predicated region
  $region34: #{vit_forward.8} parent=0 // pred_check
    _
  $region35: #{vit_forward.8} parent=0 // pred_check_branch
    %354 = sbr.rel (0) target = $region37
  $region36: #{vit_forward.8} parent=0 // pred_region
    _
  $region37: #{vit_forward.8} parent=0 // pred_fallthru
    _

// kernel: vit_forward.7
$region0: #{vit_forward.7}
  #allocation0 [shape = 'u32[]', space=smem, size = 0x4, offset = 0x4, fixed_abs, tag = 'smem constant byte address 0x4 - core index']
  #allocation1 [shape = 'u32[72,128]{1,0:T(1,128)}', space=vmem, size = 0x9000, scoped, tag = 'internal scratch']
  %s0 = inlined_call_operand.vmem [shape: f32[2,17,32], index: 0, kind: input, shape index: {}]
  %s1 = inlined_call_operand.vmem [shape: f32[1,32], index: 1, kind: input, shape index: {}]
  %s2 = inlined_call_operand.vmem [shape: f32[1,32], index: 2, kind: input, shape index: {}]
  %s3 = inlined_call_operand.vmem [shape: bf16[32,96], index: 3, kind: input, shape index: {}]
  %s4 = inlined_call_operand.vmem [shape: bf16[32,32], index: 4, kind: input, shape index: {}]
  %s5 = inlined_call_operand.vmem [shape: f32[1,32], index: 5, kind: input, shape index: {}]
  %s6 = inlined_call_operand.vmem [shape: f32[2,17,32], index: 6, kind: output, shape index: {}]
  %s7 = sld [smem:[#allocation0]]
  $region57: #{vit_forward.7} parent=0
    _
  %s9 = ssub.s32 1, %s7
  %s10 = scalar_select 0, %s9, %s7
  loop: start=0, step=1, limit=4
  $region2: #{vit_forward.7} parent=0 // loop_pre_header
    _
  $region3: #{vit_forward.7} parent=0 // loop_header
    %s12 = sphi 0, %s16
    %p13 = scmp.ge.s32.totalorder %s12, 4
    %s22 = sphi 0, %s24
    %s25 = sphi 0, %s22
    %s26 = sphi 0, %s25
    %s42 = sphi 0, %s26
    %s46 = sphi 0, %s46
    %s48 = sphi 0, %s46
    %s49 = sphi 0, %s48
    %s63 = sphi 0, %s49
    %s67 = sphi 0, %s67
    %s69 = sphi 0, %s67
    %s70 = sphi 0, %s69
    %s84 = sphi 0, %s70
    %s88 = sphi 0, %s88
    %s90 = sphi 0, %s88
    %s91 = sphi 0, %s90
    %s105 = sphi 0, %s91
    %s109 = sphi 0, %s109
    %s111 = sphi 0, %s109
    %s112 = sphi 0, %s111
    %s126 = sphi 0, %s112
    %s130 = sphi 0, %s130
    %s132 = sphi 0, %s130
    %s133 = sphi 0, %s132
    %s147 = sphi 0, %s133
    %s153 = sphi 0, %s155
    %s156 = sphi 0, %s153
    %s157 = sphi 0, %s156
    %s173 = sphi 0, %s157
  $region4: #{vit_forward.7} parent=0 // loop_header_branch
    %15 = sbr.rel (%p13) target = $region8
  $region5: #{vit_forward.7} parent=0 // loop_body
    %s17 = ssub.s32 %s12, 1
    %s18 = ssub.s32 %s12, 2
    %s19 = sadd.s32 %s12, 1
    %s20 = ssub.s32 %s12, %s19
    %p21 = scmp.eq.s32.totalorder %s20, 0
    %s23 = sadd.s32 %s22, 1
    %s24 = scalar_select %p21, %s22, %s23
    %p27 = pneg %p21
    %p28 = scmp.eq.s32.totalorder %s12, 1
    %p29 = por %p27, %p28
    %p30 = scmp.ne.s32.totalorder %s22, %s25
    %p31 = scmp.eq.s32.totalorder %s12, 0
    %p32 = por %p30, %p31
    %p33 = scmp.ne.s32.totalorder %s22, %s25
    %p34 = scmp.eq.s32.totalorder %s17, 1
    %p35 = por %p33, %p34
    %p36 = scmp.ne.s32.totalorder %s25, %s26
    %p37 = scmp.eq.s32.totalorder %s17, 0
    %p38 = por %p36, %p37
    %p39 = scmp.ne.s32.totalorder %s25, %s26
    %p40 = scmp.eq.s32.totalorder %s18, 1
    %p41 = por %p39, %p40
    %p43 = scmp.ne.s32.totalorder %s26, %s42
    %p44 = scmp.eq.s32.totalorder %s18, 0
    %p45 = por %p43, %p44
    %s47 = sadd.s32 %s46, 1
    %p50 = scmp.eq.s32.totalorder %s12, 1
    %p51 = scmp.ne.s32.totalorder %s46, %s48
    %p52 = scmp.eq.s32.totalorder %s12, 0
    %p53 = por %p51, %p52
    %p54 = scmp.ne.s32.totalorder %s46, %s48
    %p55 = scmp.eq.s32.totalorder %s17, 1
    %p56 = por %p54, %p55
    %p57 = scmp.ne.s32.totalorder %s48, %s49
    %p58 = scmp.eq.s32.totalorder %s17, 0
    %p59 = por %p57, %p58
    %p60 = scmp.ne.s32.totalorder %s48, %s49
    %p61 = scmp.eq.s32.totalorder %s18, 1
    %p62 = por %p60, %p61
    %p64 = scmp.ne.s32.totalorder %s49, %s63
    %p65 = scmp.eq.s32.totalorder %s18, 0
    %p66 = por %p64, %p65
    %s68 = sadd.s32 %s67, 1
    %p71 = scmp.eq.s32.totalorder %s12, 1
    %p72 = scmp.ne.s32.totalorder %s67, %s69
    %p73 = scmp.eq.s32.totalorder %s12, 0
    %p74 = por %p72, %p73
    %p75 = scmp.ne.s32.totalorder %s67, %s69
    %p76 = scmp.eq.s32.totalorder %s17, 1
    %p77 = por %p75, %p76
    %p78 = scmp.ne.s32.totalorder %s69, %s70
    %p79 = scmp.eq.s32.totalorder %s17, 0
    %p80 = por %p78, %p79
    %p81 = scmp.ne.s32.totalorder %s69, %s70
    %p82 = scmp.eq.s32.totalorder %s18, 1
    %p83 = por %p81, %p82
    %p85 = scmp.ne.s32.totalorder %s70, %s84
    %p86 = scmp.eq.s32.totalorder %s18, 0
    %p87 = por %p85, %p86
    %s89 = sadd.s32 %s88, 1
    %p92 = scmp.eq.s32.totalorder %s12, 1
    %p93 = scmp.ne.s32.totalorder %s88, %s90
    %p94 = scmp.eq.s32.totalorder %s12, 0
    %p95 = por %p93, %p94
    %p96 = scmp.ne.s32.totalorder %s88, %s90
    %p97 = scmp.eq.s32.totalorder %s17, 1
    %p98 = por %p96, %p97
    %p99 = scmp.ne.s32.totalorder %s90, %s91
    %p100 = scmp.eq.s32.totalorder %s17, 0
    %p101 = por %p99, %p100
    %p102 = scmp.ne.s32.totalorder %s90, %s91
    %p103 = scmp.eq.s32.totalorder %s18, 1
    %p104 = por %p102, %p103
    %p106 = scmp.ne.s32.totalorder %s91, %s105
    %p107 = scmp.eq.s32.totalorder %s18, 0
    %p108 = por %p106, %p107
    %s110 = sadd.s32 %s109, 1
    %p113 = scmp.eq.s32.totalorder %s12, 1
    %p114 = scmp.ne.s32.totalorder %s109, %s111
    %p115 = scmp.eq.s32.totalorder %s12, 0
    %p116 = por %p114, %p115
    %p117 = scmp.ne.s32.totalorder %s109, %s111
    %p118 = scmp.eq.s32.totalorder %s17, 1
    %p119 = por %p117, %p118
    %p120 = scmp.ne.s32.totalorder %s111, %s112
    %p121 = scmp.eq.s32.totalorder %s17, 0
    %p122 = por %p120, %p121
    %p123 = scmp.ne.s32.totalorder %s111, %s112
    %p124 = scmp.eq.s32.totalorder %s18, 1
    %p125 = por %p123, %p124
    %p127 = scmp.ne.s32.totalorder %s112, %s126
    %p128 = scmp.eq.s32.totalorder %s18, 0
    %p129 = por %p127, %p128
    %s131 = sadd.s32 %s130, 1
    %p134 = scmp.eq.s32.totalorder %s12, 1
    %p135 = scmp.ne.s32.totalorder %s130, %s132
    %p136 = scmp.eq.s32.totalorder %s12, 0
    %p137 = por %p135, %p136
    %p138 = scmp.ne.s32.totalorder %s130, %s132
    %p139 = scmp.eq.s32.totalorder %s17, 1
    %p140 = por %p138, %p139
    %p141 = scmp.ne.s32.totalorder %s132, %s133
    %p142 = scmp.eq.s32.totalorder %s17, 0
    %p143 = por %p141, %p142
    %p144 = scmp.ne.s32.totalorder %s132, %s133
    %p145 = scmp.eq.s32.totalorder %s18, 1
    %p146 = por %p144, %p145
    %p148 = scmp.ne.s32.totalorder %s133, %s147
    %p149 = scmp.eq.s32.totalorder %s18, 0
    %p150 = por %p148, %p149
    %s151 = ssub.s32 %s12, %s19
    %p152 = scmp.eq.s32.totalorder %s151, 0
    %s154 = sadd.s32 %s153, 1
    %s155 = scalar_select %p152, %s153, %s154
    %p158 = pneg %p152
    %p159 = scmp.eq.s32.totalorder %s12, 1
    %p160 = por %p158, %p159
    %p161 = scmp.ne.s32.totalorder %s153, %s156
    %p162 = scmp.eq.s32.totalorder %s12, 0
    %p163 = por %p161, %p162
    %p164 = scmp.ne.s32.totalorder %s153, %s156
    %p165 = scmp.eq.s32.totalorder %s17, 1
    %p166 = por %p164, %p165
    %p167 = scmp.ne.s32.totalorder %s156, %s157
    %p168 = scmp.eq.s32.totalorder %s17, 0
    %p169 = por %p167, %p168
    %p170 = scmp.ne.s32.totalorder %s156, %s157
    %p171 = scmp.eq.s32.totalorder %s18, 1
    %p172 = por %p170, %p171
    %p174 = scmp.ne.s32.totalorder %s157, %s173
    %p175 = scmp.eq.s32.totalorder %s18, 0
    %p176 = por %p174, %p175
    %p177 = scmp.le.s32.totalorder 1, %s12
    %p178 = scmp.lt.s32.totalorder %s12, 3
    %p179 = pnand %p177, %p178
    %p180 = pneg %p179
    // Predicated region
    $region9: #{vit_forward.7} parent=5 // pred_check
      _
    $region10: #{vit_forward.7} parent=5 // pred_check_branch
      %182 = sbr.rel (%p179) target = $region12
    $region11: #{vit_forward.7} parent=5 // pred_region
      %s183 = ssub.s32 %s12, 1
      // Predicated region
      $region13: #{vit_forward.7} parent=11 // pred_check
        %p184 = pneg %p59
      $region14: #{vit_forward.7} parent=11 // pred_check_branch
        %186 = sbr.rel (%p184) target = $region16
      $region15: #{vit_forward.7} parent=11 // pred_region
        _
      $region16: #{vit_forward.7} parent=11 // pred_fallthru
        _
      // Predicated region
      $region17: #{vit_forward.7} parent=11 // pred_check
        %p187 = pneg %p80
      $region18: #{vit_forward.7} parent=11 // pred_check_branch
        %189 = sbr.rel (%p187) target = $region20
      $region19: #{vit_forward.7} parent=11 // pred_region
        _
      $region20: #{vit_forward.7} parent=11 // pred_fallthru
        _
      // Predicated region
      $region21: #{vit_forward.7} parent=11 // pred_check
        %p190 = pneg %p101
      $region22: #{vit_forward.7} parent=11 // pred_check_branch
        %192 = sbr.rel (%p190) target = $region24
      $region23: #{vit_forward.7} parent=11 // pred_region
        _
      $region24: #{vit_forward.7} parent=11 // pred_fallthru
        _
      // Predicated region
      $region25: #{vit_forward.7} parent=11 // pred_check
        %p193 = pneg %p122
      $region26: #{vit_forward.7} parent=11 // pred_check_branch
        %195 = sbr.rel (%p193) target = $region28
      $region27: #{vit_forward.7} parent=11 // pred_region
        _
      $region28: #{vit_forward.7} parent=11 // pred_fallthru
        _
      // Predicated region
      $region29: #{vit_forward.7} parent=11 // pred_check
        %p196 = pneg %p143
      $region30: #{vit_forward.7} parent=11 // pred_check_branch
        %198 = sbr.rel (%p196) target = $region32
      $region31: #{vit_forward.7} parent=11 // pred_region
        _
      $region32: #{vit_forward.7} parent=11 // pred_fallthru
        _
    $region12: #{vit_forward.7} parent=5 // pred_fallthru
      _
    %p199 = scmp.lt.s32.totalorder %s12, 2
    // Predicated region
    $region33: #{vit_forward.7} parent=5 // pred_check
      %p200 = pneg %p199
    $region34: #{vit_forward.7} parent=5 // pred_check_branch
      %202 = sbr.rel (%p200) target = $region36
    $region35: #{vit_forward.7} parent=5 // pred_region
      // Predicated region
      $region37: #{vit_forward.7} parent=35 // pred_check
        %p203 = pneg %p32
      $region38: #{vit_forward.7} parent=35 // pred_check_branch
        %205 = sbr.rel (%p203) target = $region40
      $region39: #{vit_forward.7} parent=35 // pred_region
        %p206 = scmp.lt.s32.totalorder %s12, 1
        %s207 = scalar_select %p206, %s12, 1
        %s208 = smul.addr %s207, 3
        %s209 = smul.addr %s208, 8
        %s210 = scalar_lea.vmem %s0, %s209
      $region40: #{vit_forward.7} parent=35 // pred_fallthru
        _
    $region36: #{vit_forward.7} parent=5 // pred_fallthru
      _
    %p211 = scmp.le.s32.totalorder 1, %s12
    %p212 = scmp.lt.s32.totalorder %s12, 3
    %p213 = pnand %p211, %p212
    %p214 = pneg %p213
    // Predicated region
    $region41: #{vit_forward.7} parent=5 // pred_check
      _
    $region42: #{vit_forward.7} parent=5 // pred_check_branch
      %216 = sbr.rel (%p213) target = $region44
    $region43: #{vit_forward.7} parent=5 // pred_region
      %s217 = ssub.s32 %s12, 1
      %p218 = scmp.lt.s32.totalorder %s17, 1
      %s219 = scalar_select %p218, %s17, 1
      %s220 = smul.addr %s219, 3
      %s221 = smul.addr %s220, 8
      %s222 = scalar_lea.vmem %s0, %s221
      %p223 = pneg %p38
      %p224 = pneg %p35
      %p225 = pneg %p59
      %p226 = pneg %p56
      %p227 = pneg %p80
      %p228 = pneg %p77
      %p229 = pneg %p101
      %p230 = pneg %p98
      %p231 = pneg %p122
      %p232 = pneg %p119
      %p233 = pneg %p143
      %p234 = pneg %p140
      %p235 = pneg %p169
      %p236 = pneg %p166
      %p237 = scmp.lt.s32.totalorder %s17, 1
      %s238 = scalar_select %p237, %s17, 1
      %s239 = smul.addr %s238, 3
      %s240 = smul.addr %s239, 8
      %s241 = scalar_lea.vmem %s6, %s240
      %p242 = scmp.lt.s32.totalorder %s17, 1
      %s243 = scalar_select %p242, %s17, 1
      %s244 = smul.addr %s243, 3
      %s245 = smul.addr %s244, 8
      %s246 = scalar_lea.vmem %s0, %s245
      %p247 = scmp.lt.s32.totalorder %s17, 1
      %s248 = scalar_select %p247, %s17, 1
      %s249 = smul.addr %s248, 3
      %s250 = smul.addr %s249, 8
      %s251 = scalar_lea.vmem %s6, %s250
      %v253 = vld [vmem:[%s246] sm:$0xff]
      %v254 = vld [vmem:[%s246 + $0x8] sm:$0xff]
      %v255 = vld [vmem:[%s246 + $0x10] sm:$0x1]
      %v256 = vld [vmem:[%s1] sm:$0x1]
      %v257 = vld [vmem:[%s2] sm:$0x1]
      %vm258 = vcmask 261120
      %v259 = vsel %vm258, %v253, 0.0
      %260 = vadd.xlane.f32.xlu0 %v259
      %v261 = vpop.xlane.xlu0 %260
      %v262 = vsel %vm258, %v254, 0.0
      %263 = vadd.xlane.f32.xlu0 %v262
      %v264 = vpop.xlane.xlu0 %263
      %vm265 = vcmask 253952
      %v266 = vsel %vm265, %v255, 0.0
      %267 = vadd.xlane.f32.xlu0 %v266
      %v268 = vpop.xlane.xlu0 %267
      %v269 = vrcp.pop 32.0
      %v270 = vmul.f32 32.0, %v269
      %v271 = vsub.f32 1.0, %v270
      %v272 = vmul.f32 %v269, %v271
      %v273 = vadd.f32 %v269, %v272
      %vm274 = vweird.f32 %v269
      %v275 = vsel %vm274, %v269, %v273
      %v276 = vmul.f32 %v261, %v275
      %v277 = vmul.f32 %v264, %v275
      %v278 = vmul.f32 %v268, %v275
      %v279 = vsub.f32 %v253, %v276
      %v280 = vsub.f32 %v254, %v277
      %v281 = vsub.f32 %v255, %v278
      %v282 = vmul.f32 %v279, %v279
      %v283 = vmul.f32 %v280, %v280
      %v284 = vmul.f32 %v281, %v281
      %v285 = vsel %vm258, %v282, 0.0
      %286 = vadd.xlane.f32.xlu0 %v285
      %v287 = vpop.xlane.xlu0 %286
      %v288 = vsel %vm258, %v283, 0.0
      %289 = vadd.xlane.f32.xlu0 %v288
      %v290 = vpop.xlane.xlu0 %289
      %v291 = vsel %vm265, %v284, 0.0
      %292 = vadd.xlane.f32.xlu0 %v291
      %v293 = vpop.xlane.xlu0 %292
      %v294 = vmul.f32 %v287, %v275
      %v295 = vmul.f32 %v290, %v275
      %v296 = vmul.f32 %v293, %v275
      %v297 = vadd.f32 %v294, 1e-05
      %v298 = vadd.f32 %v295, 1e-05
      %v299 = vadd.f32 %v296, 1e-05
      %v300 = vrsqrt.pop %v297
      %v301 = vmul.f32 %v300, %v297
      %v302 = vmul.f32 %v301, %v300
      %v303 = vmul.f32 0.5, %v302
      %v304 = vsub.f32 1.5, %v303
      %v305 = vmul.f32 %v300, %v304
      %vm306 = vweird.f32 %v297
      %vm307 = vweird.f32 %v300
      %vm308 = vmor %vm306, %vm307
      %v309 = vsel %vm308, %v300, %v305
      %v310 = vrsqrt.pop %v298
      %v311 = vmul.f32 %v310, %v298
      %v312 = vmul.f32 %v311, %v310
      %v313 = vmul.f32 0.5, %v312
      %v314 = vsub.f32 1.5, %v313
      %v315 = vmul.f32 %v310, %v314
      %vm316 = vweird.f32 %v298
      %vm317 = vweird.f32 %v310
      %vm318 = vmor %vm316, %vm317
      %v319 = vsel %vm318, %v310, %v315
      %v320 = vrsqrt.pop %v299
      %v321 = vmul.f32 %v320, %v299
      %v322 = vmul.f32 %v321, %v320
      %v323 = vmul.f32 0.5, %v322
      %v324 = vsub.f32 1.5, %v323
      %v325 = vmul.f32 %v320, %v324
      %vm326 = vweird.f32 %v299
      %vm327 = vweird.f32 %v320
      %vm328 = vmor %vm326, %vm327
      %v329 = vsel %vm328, %v320, %v325
      %v330 = vmul.f32 %v279, %v309
      %v331 = vmul.f32 %v280, %v319
      %v332 = vmul.f32 %v281, %v329
      %v334 = vperm.slane %v256, 0
      %v336 = vmul.f32 %v330, %v334
      %v337 = vmul.f32 %v331, %v334
      %v338 = vmul.f32 %v332, %v334
      %v340 = vperm.slane %v257, 0
      %v342 = vadd.f32 %v336, %v340
      %v343 = vadd.f32 %v337, %v340
      %v344 = vadd.f32 %v338, %v340
      %v345 = vld [vmem:[%s3] sm:$0xf]
      %v346 = vld [vmem:[%s3 + $0x4] sm:$0xf]
      %v347 = vld [vmem:[%s3 + $0x8] sm:$0xf]
      %v348 = vld [vmem:[%s3 + $0xc] sm:$0xf]
      %v349 = vpack.c.bf16 %v343, %v342
      %v350 = vpack.c.bf16 %v344, %v344
      %v355 = vunpack.c.l.b16 %v345
      %v356 = vunpack.c.l.b16 %v346
      %v357 = vunpack.c.l.b16 %v347
      %v358 = vunpack.c.l.b16 %v348
      %v359 = vpack.c.b16 %v356, %v355
      %v360 = vpack.c.b16 %v358, %v357
      %v364 = vsel %vm258, %v349, 0
      %v367 = vsel %vm258, %v350, 0
      %369 = vmatpush.bf16.msra.mxu0 0
      %370 = vmatpush.bf16.msra.mxu0 0
      %371 = vmatpush.bf16.msra.mxu0 0
      %372 = vmatpush.bf16.msra.mxu0 0
      %373 = vmatpush.bf16.msra.mxu0 0
      %374 = vmatpush.bf16.msra.mxu0 0
      %375 = vmatpush.bf16.msra.mxu0 %v360
      %376 = vmatpush.bf16.msra.mxu0 %v359
      %377 = vmatmul.bf16.gmra.mxu0 %v364
      %v378 = vpop.f32.mrf.mxu0
      %v379 = vadd.f32 0.0, %v378
      %v380 = vpop.f32.mrf.mxu0
      %v381 = vadd.f32 0.0, %v380
      %382 = vmatmul.bf16.gmra.mxu0 %v367
      %v383 = vpop.f32.mrf.mxu0
      %v384 = vadd.f32 0.0, %v383
      %v385 = vpop.f32.mrf.mxu0
      %386 = vdwg.mxu0
      %390 = vrot.lane.b32.xlu0 %v379, 120
      %v391 = vpop.permute.xlu0 %390
      %392 = vrot.lane.b32.xlu0 %v381, 120
      %v393 = vpop.permute.xlu0 %392
      %394 = vrot.lane.b32.xlu0 %v384, 120
      %v395 = vpop.permute.xlu0 %394
      %399 = vrot.lane.b32.xlu0 %v379, 112
      %v400 = vpop.permute.xlu0 %399
      %401 = vrot.lane.b32.xlu0 %v381, 112
      %v402 = vpop.permute.xlu0 %401
      %403 = vrot.lane.b32.xlu0 %v384, 112
      %v404 = vpop.permute.xlu0 %403
      %408 = vrot.lane.b32.xlu0 %v379, 104
      %v409 = vpop.permute.xlu0 %408
      %410 = vrot.lane.b32.xlu0 %v381, 104
      %v411 = vpop.permute.xlu0 %410
      %412 = vrot.lane.b32.xlu0 %v384, 104
      %v413 = vpop.permute.xlu0 %412
      %v417 = vpack.c.bf16 %v379, %v379
      %v418 = vpack.c.bf16 %v381, %v381
      %v419 = vpack.c.bf16 %v384, %v384
      %v420 = vpack.c.bf16 %v391, %v391
      %v421 = vpack.c.bf16 %v393, %v393
      %v422 = vpack.c.bf16 %v395, %v395
      %v423 = vpack.c.bf16 %v400, %v400
      %v424 = vpack.c.bf16 %v402, %v402
      %v425 = vpack.c.bf16 %v404, %v404
      %v426 = vpack.c.bf16 %v409, %v409
      %v427 = vpack.c.bf16 %v411, %v411
      %v428 = vpack.c.bf16 %v413, %v413
      %v432 = vunpack.c.l.b16 %v417
      %v433 = vunpack.c.l.b16 %v418
      %v434 = vunpack.c.l.b16 %v419
      %v435 = vpack.c.b16 %v433, %v432
      %v436 = vpack.c.b16 %v434, %v434
      %437 = vrot.lane.b32.xlu0 %v435, 96
      %v438 = vpop.permute.xlu0 %437
      %439 = vrot.lane.b32.xlu0 %v436, 96
      %v440 = vpop.permute.xlu0 %439
      %vm441 = vcmask 64512
      %v443 = vsel %vm441, %v435, 0
      %v446 = vsel %vm441, %v436, 0
      %v449 = vsel %vm441, %v438, 0
      %v452 = vsel %vm441, %v440, 0
      %454 = vmatpush.bf16.xpose.msra.mxu0 0
      %455 = vmatpush.bf16.xpose.msra.mxu0 0
      %456 = vmatpush.bf16.xpose.msra.mxu0 0
      %457 = vmatpush.bf16.xpose.msra.mxu0 0
      %458 = vmatpush.bf16.xpose.msra.mxu0 0
      %459 = vmatpush.bf16.xpose.msra.mxu0 0
      %460 = vmatpush.bf16.xpose.msra.mxu0 %v452
      %461 = vmatpush.bf16.xpose.msra.mxu0 %v449
      %462 = vmatmul.bf16.gmra.mxu0 %v443
      %v463 = vpop.f32.mrf.mxu0
      %v464 = vadd.f32 0.0, %v463
      %v465 = vpop.f32.mrf.mxu0
      %v466 = vadd.f32 0.0, %v465
      %467 = vmatmul.bf16.gmra.mxu0 %v446
      %v468 = vpop.f32.mrf.mxu0
      %v469 = vadd.f32 0.0, %v468
      %v470 = vpop.f32.mrf.mxu0
      %471 = vdwg.mxu0
      %v475 = vunpack.c.l.b16 %v420
      %v476 = vunpack.c.l.b16 %v421
      %v477 = vunpack.c.l.b16 %v422
      %v478 = vpack.c.b16 %v476, %v475
      %v479 = vpack.c.b16 %v477, %v477
      %480 = vrot.lane.b32.xlu0 %v478, 96
      %v481 = vpop.permute.xlu0 %480
      %482 = vrot.lane.b32.xlu0 %v479, 96
      %v483 = vpop.permute.xlu0 %482
      %v485 = vsel %vm441, %v478, 0
      %v488 = vsel %vm441, %v479, 0
      %v491 = vsel %vm441, %v481, 0
      %v494 = vsel %vm441, %v483, 0
      %496 = vmatpush.bf16.xpose.msra.mxu0 0
      %497 = vmatpush.bf16.xpose.msra.mxu0 0
      %498 = vmatpush.bf16.xpose.msra.mxu0 0
      %499 = vmatpush.bf16.xpose.msra.mxu0 0
      %500 = vmatpush.bf16.xpose.msra.mxu0 0
      %501 = vmatpush.bf16.xpose.msra.mxu0 0
      %502 = vmatpush.bf16.xpose.msra.mxu0 %v494
      %503 = vmatpush.bf16.xpose.msra.mxu0 %v491
      %504 = vmatmul.bf16.gmra.mxu0 %v485
      %v505 = vpop.f32.mrf.mxu0
      %v506 = vadd.f32 0.0, %v505
      %v507 = vpop.f32.mrf.mxu0
      %v508 = vadd.f32 0.0, %v507
      %509 = vmatmul.bf16.gmra.mxu0 %v488
      %v510 = vpop.f32.mrf.mxu0
      %v511 = vadd.f32 0.0, %v510
      %v512 = vpop.f32.mrf.mxu0
      %513 = vdwg.mxu0
      %v517 = vunpack.c.l.b16 %v423
      %v518 = vunpack.c.l.b16 %v424
      %v519 = vunpack.c.l.b16 %v425
      %v520 = vpack.c.b16 %v518, %v517
      %v521 = vpack.c.b16 %v519, %v519
      %522 = vrot.lane.b32.xlu0 %v520, 96
      %v523 = vpop.permute.xlu0 %522
      %524 = vrot.lane.b32.xlu0 %v521, 96
      %v525 = vpop.permute.xlu0 %524
      %v527 = vsel %vm441, %v520, 0
      %v530 = vsel %vm441, %v521, 0
      %v533 = vsel %vm441, %v523, 0
      %v536 = vsel %vm441, %v525, 0
      %538 = vmatpush.bf16.xpose.msra.mxu0 0
      %539 = vmatpush.bf16.xpose.msra.mxu0 0
      %540 = vmatpush.bf16.xpose.msra.mxu0 0
      %541 = vmatpush.bf16.xpose.msra.mxu0 0
      %542 = vmatpush.bf16.xpose.msra.mxu0 0
      %543 = vmatpush.bf16.xpose.msra.mxu0 0
      %544 = vmatpush.bf16.xpose.msra.mxu0 %v536
      %545 = vmatpush.bf16.xpose.msra.mxu0 %v533
      %546 = vmatmul.bf16.gmra.mxu0 %v527
      %v547 = vpop.f32.mrf.mxu0
      %v548 = vadd.f32 0.0, %v547
      %v549 = vpop.f32.mrf.mxu0
      %v550 = vadd.f32 0.0, %v549
      %551 = vmatmul.bf16.gmra.mxu0 %v530
      %v552 = vpop.f32.mrf.mxu0
      %v553 = vadd.f32 0.0, %v552
      %v554 = vpop.f32.mrf.mxu0
      %555 = vdwg.mxu0
      %v559 = vunpack.c.l.b16 %v426
      %v560 = vunpack.c.l.b16 %v427
      %v561 = vunpack.c.l.b16 %v428
      %v562 = vpack.c.b16 %v560, %v559
      %v563 = vpack.c.b16 %v561, %v561
      %564 = vrot.lane.b32.xlu0 %v562, 96
      %v565 = vpop.permute.xlu0 %564
      %566 = vrot.lane.b32.xlu0 %v563, 96
      %v567 = vpop.permute.xlu0 %566
      %v569 = vsel %vm441, %v562, 0
      %v572 = vsel %vm441, %v563, 0
      %v575 = vsel %vm441, %v565, 0
      %v578 = vsel %vm441, %v567, 0
      %580 = vmatpush.bf16.xpose.msra.mxu0 0
      %581 = vmatpush.bf16.xpose.msra.mxu0 0
      %582 = vmatpush.bf16.xpose.msra.mxu0 0
      %583 = vmatpush.bf16.xpose.msra.mxu0 0
      %584 = vmatpush.bf16.xpose.msra.mxu0 0
      %585 = vmatpush.bf16.xpose.msra.mxu0 0
      %586 = vmatpush.bf16.xpose.msra.mxu0 %v578
      %587 = vmatpush.bf16.xpose.msra.mxu0 %v575
      %588 = vmatmul.bf16.gmra.mxu0 %v569
      %v589 = vpop.f32.mrf.mxu0
      %v590 = vadd.f32 0.0, %v589
      %v591 = vpop.f32.mrf.mxu0
      %v592 = vadd.f32 0.0, %v591
      %593 = vmatmul.bf16.gmra.mxu0 %v572
      %v594 = vpop.f32.mrf.mxu0
      %v595 = vadd.f32 0.0, %v594
      %v596 = vpop.f32.mrf.mxu0
      %597 = vdwg.mxu0
      %v598 = vmul.f32 %v464, 0.35355338
      %v599 = vmul.f32 %v466, 0.35355338
      %v600 = vmul.f32 %v469, 0.35355338
      %v601 = vmul.f32 %v506, 0.35355338
      %v602 = vmul.f32 %v508, 0.35355338
      %v603 = vmul.f32 %v511, 0.35355338
      %v604 = vmul.f32 %v548, 0.35355338
      %v605 = vmul.f32 %v550, 0.35355338
      %v606 = vmul.f32 %v553, 0.35355338
      %v607 = vmul.f32 %v590, 0.35355338
      %v608 = vmul.f32 %v592, 0.35355338
      %v609 = vmul.f32 %v595, 0.35355338
      %vm610 = vcmask 138240
      %v611 = vsel %vm610, %v598, -inf
      %612 = vmax.xlane.f32.xlu0 %v611
      %v613 = vpop.xlane.xlu0 %612
      %v614 = vsel %vm610, %v599, -inf
      %615 = vmax.xlane.f32.xlu0 %v614
      %v616 = vpop.xlane.xlu0 %615
      %vm617 = vcmask 131072
      %v618 = vsel %vm617, %v600, -inf
      %619 = vmax.xlane.f32.xlu0 %v618
      %v620 = vpop.xlane.xlu0 %619
      %v621 = vsel %vm610, %v601, -inf
      %622 = vmax.xlane.f32.xlu0 %v621
      %v623 = vpop.xlane.xlu0 %622
      %v624 = vsel %vm610, %v602, -inf
      %625 = vmax.xlane.f32.xlu0 %v624
      %v626 = vpop.xlane.xlu0 %625
      %v627 = vsel %vm617, %v603, -inf
      %628 = vmax.xlane.f32.xlu0 %v627
      %v629 = vpop.xlane.xlu0 %628
      %v630 = vsel %vm610, %v604, -inf
      %631 = vmax.xlane.f32.xlu0 %v630
      %v632 = vpop.xlane.xlu0 %631
      %v633 = vsel %vm610, %v605, -inf
      %634 = vmax.xlane.f32.xlu0 %v633
      %v635 = vpop.xlane.xlu0 %634
      %v636 = vsel %vm617, %v606, -inf
      %637 = vmax.xlane.f32.xlu0 %v636
      %v638 = vpop.xlane.xlu0 %637
      %v639 = vsel %vm610, %v607, -inf
      %640 = vmax.xlane.f32.xlu0 %v639
      %v641 = vpop.xlane.xlu0 %640
      %v642 = vsel %vm610, %v608, -inf
      %643 = vmax.xlane.f32.xlu0 %v642
      %v644 = vpop.xlane.xlu0 %643
      %v645 = vsel %vm617, %v609, -inf
      %646 = vmax.xlane.f32.xlu0 %v645
      %v647 = vpop.xlane.xlu0 %646
      %v648 = vsub.f32 %v598, %v613
      %v649 = vsub.f32 %v599, %v616
      %v650 = vsub.f32 %v600, %v620
      %v651 = vsub.f32 %v601, %v623
      %v652 = vsub.f32 %v602, %v626
      %v653 = vsub.f32 %v603, %v629
      %v654 = vsub.f32 %v604, %v632
      %v655 = vsub.f32 %v605, %v635
      %v656 = vsub.f32 %v606, %v638
      %v657 = vsub.f32 %v607, %v641
      %v658 = vsub.f32 %v608, %v644
      %v659 = vsub.f32 %v609, %v647
      %v660 = vmul.f32 %v648, 1.442695
      %v661 = vpow.pop %v660
      %v662 = vmul.f32 %v649, 1.442695
      %v663 = vpow.pop %v662
      %v664 = vmul.f32 %v650, 1.442695
      %v665 = vpow.pop %v664
      %v666 = vmul.f32 %v651, 1.442695
      %v667 = vpow.pop %v666
      %v668 = vmul.f32 %v652, 1.442695
      %v669 = vpow.pop %v668
      %v670 = vmul.f32 %v653, 1.442695
      %v671 = vpow.pop %v670
      %v672 = vmul.f32 %v654, 1.442695
      %v673 = vpow.pop %v672
      %v674 = vmul.f32 %v655, 1.442695
      %v675 = vpow.pop %v674
      %v676 = vmul.f32 %v656, 1.442695
      %v677 = vpow.pop %v676
      %v678 = vmul.f32 %v657, 1.442695
      %v679 = vpow.pop %v678
      %v680 = vmul.f32 %v658, 1.442695
      %v681 = vpow.pop %v680
      %v682 = vmul.f32 %v659, 1.442695
      %v683 = vpow.pop %v682
      %v684 = vsel %vm610, %v661, 0.0
      %685 = vadd.xlane.f32.xlu0 %v684
      %v686 = vpop.xlane.xlu0 %685
      %v687 = vsel %vm610, %v663, 0.0
      %688 = vadd.xlane.f32.xlu0 %v687
      %v689 = vpop.xlane.xlu0 %688
      %v690 = vsel %vm617, %v665, 0.0
      %691 = vadd.xlane.f32.xlu0 %v690
      %v692 = vpop.xlane.xlu0 %691
      %v693 = vsel %vm610, %v667, 0.0
      %694 = vadd.xlane.f32.xlu0 %v693
      %v695 = vpop.xlane.xlu0 %694
      %v696 = vsel %vm610, %v669, 0.0
      %697 = vadd.xlane.f32.xlu0 %v696
      %v698 = vpop.xlane.xlu0 %697
      %v699 = vsel %vm617, %v671, 0.0
      %700 = vadd.xlane.f32.xlu0 %v699
      %v701 = vpop.xlane.xlu0 %700
      %v702 = vsel %vm610, %v673, 0.0
      %703 = vadd.xlane.f32.xlu0 %v702
      %v704 = vpop.xlane.xlu0 %703
      %v705 = vsel %vm610, %v675, 0.0
      %706 = vadd.xlane.f32.xlu0 %v705
      %v707 = vpop.xlane.xlu0 %706
      %v708 = vsel %vm617, %v677, 0.0
      %709 = vadd.xlane.f32.xlu0 %v708
      %v710 = vpop.xlane.xlu0 %709
      %v711 = vsel %vm610, %v679, 0.0
      %712 = vadd.xlane.f32.xlu0 %v711
      %v713 = vpop.xlane.xlu0 %712
      %v714 = vsel %vm610, %v681, 0.0
      %715 = vadd.xlane.f32.xlu0 %v714
      %v716 = vpop.xlane.xlu0 %715
      %v717 = vsel %vm617, %v683, 0.0
      %718 = vadd.xlane.f32.xlu0 %v717
      %v719 = vpop.xlane.xlu0 %718
      %v720 = vrcp.pop %v686
      %v721 = vrcp.pop %v689
      %v722 = vrcp.pop %v692
      %v723 = vrcp.pop %v695
      %v724 = vrcp.pop %v698
      %v725 = vrcp.pop %v701
      %v726 = vrcp.pop %v704
      %v727 = vrcp.pop %v707
      %v728 = vrcp.pop %v710
      %v729 = vrcp.pop %v713
      %v730 = vrcp.pop %v716
      %v731 = vrcp.pop %v719
      %v732 = vmul.f32 %v661, %v720
      %v733 = vmul.f32 %v663, %v721
      %v734 = vmul.f32 %v665, %v722
      %v735 = vmul.f32 %v667, %v723
      %v736 = vmul.f32 %v669, %v724
      %v737 = vmul.f32 %v671, %v725
      %v738 = vmul.f32 %v673, %v726
      %v739 = vmul.f32 %v675, %v727
      %v740 = vmul.f32 %v677, %v728
      %v741 = vmul.f32 %v679, %v729
      %v742 = vmul.f32 %v681, %v730
      %v743 = vmul.f32 %v683, %v731
      %v744 = vpack.c.bf16 %v732, %v732
      %v745 = vpack.c.bf16 %v733, %v733
      %v746 = vpack.c.bf16 %v734, %v734
      %v747 = vpack.c.bf16 %v735, %v735
      %v748 = vpack.c.bf16 %v736, %v736
      %v749 = vpack.c.bf16 %v737, %v737
      %v750 = vpack.c.bf16 %v738, %v738
      %v751 = vpack.c.bf16 %v739, %v739
      %v752 = vpack.c.bf16 %v740, %v740
      %v753 = vpack.c.bf16 %v741, %v741
      %v754 = vpack.c.bf16 %v742, %v742
      %v755 = vpack.c.bf16 %v743, %v743
      %v759 = vunpack.c.l.b16 %v744
      %v760 = vunpack.c.l.b16 %v745
      %v761 = vunpack.c.l.b16 %v746
      %v762 = vpack.c.b16 %v760, %v759
      %v763 = vpack.c.b16 %v761, %v761
      %764 = vrot.lane.b32.xlu0 %v435, 64
      %v765 = vpop.permute.xlu0 %764
      %766 = vrot.lane.b32.xlu0 %v436, 64
      %v767 = vpop.permute.xlu0 %766
      %v770 = vsel %vm610, %v762, 0
      %v773 = vsel %vm610, %v763, 0
      %vm775 = vcmask 1040384
      %v776 = vsel 0, 4294967295, 65535
      %v777 = vsel %vm775, %v776, 0
      %v779 = vand.u32 %v767, %v777
      %781 = vmatpush.bf16.msra.mxu0 0
      %782 = vmatpush.bf16.msra.mxu0 0
      %783 = vmatpush.bf16.msra.mxu0 0
      %784 = vmatpush.bf16.msra.mxu0 0
      %785 = vmatpush.bf16.msra.mxu0 0
      %786 = vmatpush.bf16.msra.mxu0 0
      %787 = vmatpush.bf16.msra.mxu0 %v779
      %788 = vmatpush.bf16.msra.mxu0 %v765
      %789 = vmatmul.bf16.gmra.mxu0 %v770
      %v790 = vpop.f32.mrf.mxu0
      %v791 = vadd.f32 0.0, %v790
      %v792 = vpop.f32.mrf.mxu0
      %v793 = vadd.f32 0.0, %v792
      %794 = vmatmul.bf16.gmra.mxu0 %v773
      %v795 = vpop.f32.mrf.mxu0
      %v796 = vadd.f32 0.0, %v795
      %v797 = vpop.f32.mrf.mxu0
      %798 = vdwg.mxu0
      %v802 = vunpack.c.l.b16 %v747
      %v803 = vunpack.c.l.b16 %v748
      %v804 = vunpack.c.l.b16 %v749
      %v805 = vpack.c.b16 %v803, %v802
      %v806 = vpack.c.b16 %v804, %v804
      %807 = vrot.lane.b32.xlu0 %v478, 64
      %v808 = vpop.permute.xlu0 %807
      %809 = vrot.lane.b32.xlu0 %v479, 64
      %v810 = vpop.permute.xlu0 %809
      %v813 = vsel %vm610, %v805, 0
      %v816 = vsel %vm610, %v806, 0
      %v819 = vand.u32 %v810, %v777
      %821 = vmatpush.bf16.msra.mxu0 0
      %822 = vmatpush.bf16.msra.mxu0 0
      %823 = vmatpush.bf16.msra.mxu0 0
      %824 = vmatpush.bf16.msra.mxu0 0
      %825 = vmatpush.bf16.msra.mxu0 0
      %826 = vmatpush.bf16.msra.mxu0 0
      %827 = vmatpush.bf16.msra.mxu0 %v819
      %828 = vmatpush.bf16.msra.mxu0 %v808
      %829 = vmatmul.bf16.gmra.mxu0 %v813
      %v830 = vpop.f32.mrf.mxu0
      %v831 = vadd.f32 0.0, %v830
      %v832 = vpop.f32.mrf.mxu0
      %v833 = vadd.f32 0.0, %v832
      %834 = vmatmul.bf16.gmra.mxu0 %v816
      %v835 = vpop.f32.mrf.mxu0
      %v836 = vadd.f32 0.0, %v835
      %v837 = vpop.f32.mrf.mxu0
      %838 = vdwg.mxu0
      %v842 = vunpack.c.l.b16 %v750
      %v843 = vunpack.c.l.b16 %v751
      %v844 = vunpack.c.l.b16 %v752
      %v845 = vpack.c.b16 %v843, %v842
      %v846 = vpack.c.b16 %v844, %v844
      %847 = vrot.lane.b32.xlu0 %v520, 64
      %v848 = vpop.permute.xlu0 %847
      %849 = vrot.lane.b32.xlu0 %v521, 64
      %v850 = vpop.permute.xlu0 %849
      %v853 = vsel %vm610, %v845, 0
      %v856 = vsel %vm610, %v846, 0
      %v859 = vand.u32 %v850, %v777
      %861 = vmatpush.bf16.msra.mxu0 0
      %862 = vmatpush.bf16.msra.mxu0 0
      %863 = vmatpush.bf16.msra.mxu0 0
      %864 = vmatpush.bf16.msra.mxu0 0
      %865 = vmatpush.bf16.msra.mxu0 0
      %866 = vmatpush.bf16.msra.mxu0 0
      %867 = vmatpush.bf16.msra.mxu0 %v859
      %868 = vmatpush.bf16.msra.mxu0 %v848
      %869 = vmatmul.bf16.gmra.mxu0 %v853
      %v870 = vpop.f32.mrf.mxu0
      %v871 = vadd.f32 0.0, %v870
      %v872 = vpop.f32.mrf.mxu0
      %v873 = vadd.f32 0.0, %v872
      %874 = vmatmul.bf16.gmra.mxu0 %v856
      %v875 = vpop.f32.mrf.mxu0
      %v876 = vadd.f32 0.0, %v875
      %v877 = vpop.f32.mrf.mxu0
      %878 = vdwg.mxu0
      %v882 = vunpack.c.l.b16 %v753
      %v883 = vunpack.c.l.b16 %v754
      %v884 = vunpack.c.l.b16 %v755
      %v885 = vpack.c.b16 %v883, %v882
      %v886 = vpack.c.b16 %v884, %v884
      %887 = vrot.lane.b32.xlu0 %v562, 64
      %v888 = vpop.permute.xlu0 %887
      %889 = vrot.lane.b32.xlu0 %v563, 64
      %v890 = vpop.permute.xlu0 %889
      %v893 = vsel %vm610, %v885, 0
      %v896 = vsel %vm610, %v886, 0
      %v899 = vand.u32 %v890, %v777
      %901 = vmatpush.bf16.msra.mxu0 0
      %902 = vmatpush.bf16.msra.mxu0 0
      %903 = vmatpush.bf16.msra.mxu0 0
      %904 = vmatpush.bf16.msra.mxu0 0
      %905 = vmatpush.bf16.msra.mxu0 0
      %906 = vmatpush.bf16.msra.mxu0 0
      %907 = vmatpush.bf16.msra.mxu0 %v899
      %908 = vmatpush.bf16.msra.mxu0 %v888
      %909 = vmatmul.bf16.gmra.mxu0 %v893
      %v910 = vpop.f32.mrf.mxu0
      %v911 = vadd.f32 0.0, %v910
      %v912 = vpop.f32.mrf.mxu0
      %v913 = vadd.f32 0.0, %v912
      %914 = vmatmul.bf16.gmra.mxu0 %v896
      %v915 = vpop.f32.mrf.mxu0
      %v916 = vadd.f32 0.0, %v915
      %v917 = vpop.f32.mrf.mxu0
      %918 = vdwg.mxu0
      %922 = vrot.lane.b32.xlu0 %v831, 8
      %v923 = vpop.permute.xlu0 %922
      %924 = vrot.lane.b32.xlu0 %v833, 8
      %v925 = vpop.permute.xlu0 %924
      %926 = vrot.lane.b32.xlu0 %v836, 8
      %v927 = vpop.permute.xlu0 %926
      %934 = vrot.lane.b32.xlu0 %v871, 16
      %v935 = vpop.permute.xlu0 %934
      %936 = vrot.lane.b32.xlu0 %v873, 16
      %v937 = vpop.permute.xlu0 %936
      %938 = vrot.lane.b32.xlu0 %v876, 16
      %v939 = vpop.permute.xlu0 %938
      %946 = vrot.lane.b32.xlu0 %v911, 24
      %v947 = vpop.permute.xlu0 %946
      %948 = vrot.lane.b32.xlu0 %v913, 24
      %v949 = vpop.permute.xlu0 %948
      %950 = vrot.lane.b32.xlu0 %v916, 24
      %v951 = vpop.permute.xlu0 %950
      %v955 = vsel %vm441, %v791, %v923
      %v956 = vsel %vm441, %v793, %v925
      %v957 = vsel %vm441, %v796, %v927
      %vm958 = vcmask 130048
      %v959 = vsel %vm958, %v955, %v935
      %v960 = vsel %vm958, %v956, %v937
      %v961 = vsel %vm958, %v957, %v939
      %vm962 = vcmask 195584
      %v963 = vsel %vm962, %v959, %v947
      %v964 = vsel %vm962, %v960, %v949
      %v965 = vsel %vm962, %v961, %v951
      %v966 = vld [vmem:[%s4] sm:$0xf]
      %v967 = vld [vmem:[%s4 + $0x4] sm:$0xf]
      %v968 = vld [vmem:[%s4 + $0x8] sm:$0xf]
      %v969 = vld [vmem:[%s4 + $0xc] sm:$0xf]
      %v970 = vpack.c.bf16 %v964, %v963
      %v971 = vpack.c.bf16 %v965, %v965
      %v972 = vld [vmem:[%s5] sm:$0x1]
      %v974 = vperm.slane %v972, 0
      %v980 = vunpack.c.l.b16 %v966
      %v981 = vunpack.c.l.b16 %v967
      %v982 = vunpack.c.l.b16 %v968
      %v983 = vunpack.c.l.b16 %v969
      %v984 = vpack.c.b16 %v981, %v980
      %v985 = vpack.c.b16 %v983, %v982
      %v989 = vsel %vm258, %v970, 0
      %v992 = vsel %vm258, %v971, 0
      %994 = vmatpush.bf16.msra.mxu0 0
      %995 = vmatpush.bf16.msra.mxu0 0
      %996 = vmatpush.bf16.msra.mxu0 0
      %997 = vmatpush.bf16.msra.mxu0 0
      %998 = vmatpush.bf16.msra.mxu0 0
      %999 = vmatpush.bf16.msra.mxu0 0
      %1000 = vmatpush.bf16.msra.mxu0 %v985
      %1001 = vmatpush.bf16.msra.mxu0 %v984
      %1002 = vmatmul.bf16.gmra.mxu0 %v989
      %v1003 = vpop.f32.mrf.mxu0
      %v1004 = vadd.f32 %v974, %v1003
      %v1005 = vpop.f32.mrf.mxu0
      %v1006 = vadd.f32 %v974, %v1005
      %1007 = vmatmul.bf16.gmra.mxu0 %v992
      %v1008 = vpop.f32.mrf.mxu0
      %v1009 = vadd.f32 %v974, %v1008
      %v1010 = vpop.f32.mrf.mxu0
      %1011 = vdwg.mxu0
      %v1012 = vadd.f32 %v1004, %v253
      %v1013 = vadd.f32 %v1006, %v254
      %v1014 = vadd.f32 %v1009, %v255
      %1015 = vst.msk [vmem:[%s251] sm:$0xff] %vm258, %v1012
      %1016 = vst.msk [vmem:[%s251 + $0x8] sm:$0xff] %vm258, %v1013
      %1017 = vst.msk [vmem:[%s251 + $0x10] sm:$0x1] %vm265, %v1014
      %p1018 = scmp.lt.s32.totalorder %s17, 1
      %s1019 = scalar_select %p1018, %s17, 1
      %s1020 = smul.addr %s1019, 3
      %s1021 = smul.addr %s1020, 8
      %s1022 = scalar_lea.vmem %s6, %s1021
      // Predicated region
      $region45: #{vit_forward.7} parent=43 // pred_check
        %p1023 = pneg %p166
      $region46: #{vit_forward.7} parent=43 // pred_check_branch
        %1025 = sbr.rel (%p1023) target = $region48
      $region47: #{vit_forward.7} parent=43 // pred_region
        _
      $region48: #{vit_forward.7} parent=43 // pred_fallthru
        _
    $region44: #{vit_forward.7} parent=5 // pred_fallthru
      _
    %p1026 = scmp.le.s32.totalorder 2, %s12
    // Predicated region
    $region49: #{vit_forward.7} parent=5 // pred_check
      %p1027 = pneg %p1026
    $region50: #{vit_forward.7} parent=5 // pred_check_branch
      %1029 = sbr.rel (%p1027) target = $region52
    $region51: #{vit_forward.7} parent=5 // pred_region
      %s1030 = ssub.s32 %s12, 2
      // Predicated region
      $region53: #{vit_forward.7} parent=51 // pred_check
        %p1031 = pneg %p172
      $region54: #{vit_forward.7} parent=51 // pred_check_branch
        %1033 = sbr.rel (%p1031) target = $region56
      $region55: #{vit_forward.7} parent=51 // pred_region
        %p1034 = scmp.lt.s32.totalorder %s18, 1
        %s1035 = scalar_select %p1034, %s18, 1
        %s1036 = smul.addr %s1035, 3
        %s1037 = smul.addr %s1036, 8
        %s1038 = scalar_lea.vmem %s6, %s1037
      $region56: #{vit_forward.7} parent=51 // pred_fallthru
        _
    $region52: #{vit_forward.7} parent=5 // pred_fallthru
      _
  $region6: #{vit_forward.7} parent=0 // loop_footer
    %s16 = sadd.s32 1, %s12
  $region7: #{vit_forward.7} parent=0 // loop_footer_branch
    %11 = sbr.rel target = $region3
  $region8: #{vit_forward.7} parent=0 // loop_exit
    _

// kernel: vit_forward.11
$region0: #{vit_forward.11}
  #allocation0 [shape = 'u32[]', space=smem, size = 0x4, offset = 0x4, fixed_abs, tag = 'smem constant byte address 0x4 - core index']
  #allocation1 [shape = 'u32[72,128]{1,0:T(1,128)}', space=vmem, size = 0x9000, scoped, tag = 'internal scratch']
  %s0 = inlined_call_operand.vmem [shape: f32[2,32], index: 0, kind: input, shape index: {}]
  %s1 = inlined_call_operand.vmem [shape: f32[1,32], index: 1, kind: input, shape index: {}]
  %s2 = inlined_call_operand.vmem [shape: f32[1,32], index: 2, kind: input, shape index: {}]
  %s3 = inlined_call_operand.vmem [shape: bf16[32,10], index: 3, kind: input, shape index: {}]
  %s4 = inlined_call_operand.vmem [shape: f32[1,10], index: 4, kind: input, shape index: {}]
  %s5 = inlined_call_operand.hbm [shape: f32[2,10], index: 5, kind: output, shape index: {}]
  %s6 = sld [smem:[#allocation0]]
  $region30: #{vit_forward.11} parent=0
    _
  %s8 = ssub.s32 1, %s6
  %s9 = scalar_select 0, %s8, %s6
  $region1: #{vit_forward.11} parent=0
    #allocation2 [shape = 'u8[1024]{0}', space=vmem, size = 0x400, scoped, tag = 'output window, operand 0, single buffered']
    #allocation3 [shape = 's32[1]{0}', space=sflag, size = 0x4, scoped, tag = 'scoped memory for vit_forward.11']
    %10 = vsyncpa [#allocation3], 0
    // Predicated region
    $region2: #{vit_forward.11} parent=1 // pred_check
      _
    $region3: #{vit_forward.11} parent=1 // pred_check_branch
      %12 = sbr.rel (0) target = $region5
    $region4: #{vit_forward.11} parent=1 // pred_region
      _
    $region5: #{vit_forward.11} parent=1 // pred_fallthru
      _
    // Predicated region
    $region6: #{vit_forward.11} parent=1 // pred_check
      _
    $region7: #{vit_forward.11} parent=1 // pred_check_branch
      %14 = sbr.rel (0) target = $region9
    $region8: #{vit_forward.11} parent=1 // pred_region
      _
    $region9: #{vit_forward.11} parent=1 // pred_fallthru
      _
    // Predicated region
    $region10: #{vit_forward.11} parent=1 // pred_check
      _
    $region11: #{vit_forward.11} parent=1 // pred_check_branch
      %16 = sbr.rel (0) target = $region13
    $region12: #{vit_forward.11} parent=1 // pred_region
      _
    $region13: #{vit_forward.11} parent=1 // pred_fallthru
      _
    // Predicated region
    $region14: #{vit_forward.11} parent=1 // pred_check
      _
    $region15: #{vit_forward.11} parent=1 // pred_check_branch
      %18 = sbr.rel (0) target = $region17
    $region16: #{vit_forward.11} parent=1 // pred_region
      _
    $region17: #{vit_forward.11} parent=1 // pred_fallthru
      _
    // Predicated region
    $region18: #{vit_forward.11} parent=1 // pred_check
      _
    $region19: #{vit_forward.11} parent=1 // pred_check_branch
      %20 = sbr.rel (0) target = $region21
    $region20: #{vit_forward.11} parent=1 // pred_region
      _
    $region21: #{vit_forward.11} parent=1 // pred_fallthru
      _
    %v22 = vld [vmem:[%s0] sm:$0x3]
    %v23 = vld [vmem:[%s1] sm:$0x1]
    %v24 = vld [vmem:[%s2] sm:$0x1]
    %vm25 = vcmask 254976
    %v26 = vsel %vm25, %v22, 0.0
    %27 = vadd.xlane.f32.xlu0 %v26
    %v28 = vpop.xlane.xlu0 %27
    %v29 = vrcp.pop 32.0
    %v30 = vmul.f32 32.0, %v29
    %v31 = vsub.f32 1.0, %v30
    %v32 = vmul.f32 %v29, %v31
    %v33 = vadd.f32 %v29, %v32
    %vm34 = vweird.f32 %v29
    %v35 = vsel %vm34, %v29, %v33
    %v36 = vmul.f32 %v28, %v35
    %v37 = vsub.f32 %v22, %v36
    %v38 = vmul.f32 %v37, %v37
    %v39 = vsel %vm25, %v38, 0.0
    %40 = vadd.xlane.f32.xlu0 %v39
    %v41 = vpop.xlane.xlu0 %40
    %v42 = vmul.f32 %v41, %v35
    %v43 = vadd.f32 %v42, 1e-05
    %v44 = vrsqrt.pop %v43
    %v45 = vmul.f32 %v44, %v43
    %v46 = vmul.f32 %v45, %v44
    %v47 = vmul.f32 0.5, %v46
    %v48 = vsub.f32 1.5, %v47
    %v49 = vmul.f32 %v44, %v48
    %vm50 = vweird.f32 %v43
    %vm51 = vweird.f32 %v44
    %vm52 = vmor %vm50, %vm51
    %v53 = vsel %vm52, %v44, %v49
    %v54 = vmul.f32 %v37, %v53
    %v56 = vperm.slane %v23, 0
    %v58 = vmul.f32 %v54, %v56
    %v60 = vperm.slane %v24, 0
    %v62 = vadd.f32 %v58, %v60
    %v63 = vld [vmem:[%s3] sm:$0xf]
    %v64 = vld [vmem:[%s3 + $0x4] sm:$0xf]
    %v65 = vld [vmem:[%s3 + $0x8] sm:$0xf]
    %v66 = vld [vmem:[%s3 + $0xc] sm:$0xf]
    %v67 = vpack.c.bf16 %v62, %v62
    %v68 = vld [vmem:[%s4] sm:$0x1]
    %v70 = vperm.slane %v68, 0
    %v76 = vunpack.c.l.b16 %v63
    %v77 = vunpack.c.l.b16 %v64
    %v78 = vunpack.c.l.b16 %v65
    %v79 = vunpack.c.l.b16 %v66
    %v80 = vpack.c.b16 %v77, %v76
    %v81 = vpack.c.b16 %v79, %v78
    %vm84 = vcmask 261120
    %v86 = vsel %vm84, %v67, 0
    %88 = vmatpush.bf16.msra.mxu0 0
    %89 = vmatpush.bf16.msra.mxu0 0
    %90 = vmatpush.bf16.msra.mxu0 0
    %91 = vmatpush.bf16.msra.mxu0 0
    %92 = vmatpush.bf16.msra.mxu0 0
    %93 = vmatpush.bf16.msra.mxu0 0
    %94 = vmatpush.bf16.msra.mxu0 %v81
    %95 = vmatpush.bf16.msra.mxu0 %v80
    %96 = vmatmul.bf16.gmra.mxu0 %v86
    %v97 = vpop.f32.mrf.mxu0
    %v98 = vadd.f32 %v70, %v97
    %v99 = vpop.f32.mrf.mxu0
    %100 = vdwg.mxu0
    %vm101 = vcmask 74752
    %102 = vst.msk [vmem:[#allocation2] sm:$0x3] %vm101, %v98
    // Predicated region
    $region22: #{vit_forward.11} parent=1 // pred_check
      _
    $region23: #{vit_forward.11} parent=1 // pred_check_branch
      %104 = sbr.rel (0) target = $region25
    $region24: #{vit_forward.11} parent=1 // pred_region
      %106 = vsyncadd [#allocation3], 0
      %s108 = sshll.u32 [#allocation2], 4
      %s109 = int_to_ptr.vmem [resolvable:$true] %s108
      %s110 = sshll.u32 %s5, 4
      %s111 = int_to_ptr.hbm [resolvable:$true] %s110
      %113 = dma.vmem_to_hbm [thread:$0]  %s109, 32, %s111, [#allocation3]
    $region25: #{vit_forward.11} parent=1 // pred_fallthru
      _
    // Predicated region
    $region26: #{vit_forward.11} parent=1 // pred_check
      _
    $region27: #{vit_forward.11} parent=1 // pred_check_branch
      %115 = sbr.rel (0) target = $region29
    $region28: #{vit_forward.11} parent=1 // pred_region
      %117 = dma.done [#allocation3], 32
    $region29: #{vit_forward.11} parent=1 // pred_fallthru
      _
    %118 = vsyncpa [#allocation3], 1

</llo_original>
